<compile_context>
chip_gen: v5e
topology: v5e:2x2
jax: 0.10.0
libtpu: 0.0.40
codegen_flags: <defaults>
</compile_context>

<pallas_src>
import functools

import jax
import jax.numpy as jnp
from jax.experimental import pallas as pl
from jax.experimental.pallas import tpu as pltpu


def _round_up(x, m):
    return (x + m - 1) // m * m


# ----------------------------------------------------------------------------
# Kernel: one batch tile of the full VAE forward
# ----------------------------------------------------------------------------
def _vae_kernel(x_ref, eps_ref, w_in_ref, w_mid_ref, w_out_ref,
                b_mid_ref, b_out_ref, out_ref, *, input_dim, latent_dim):
    """
    x_ref   : (TB, D)        f32   input rows
    eps_ref : (TB, L)        f32   reparameterization noise
    w_in_ref: (D, Lp)        bf16  ew1 (cols >= L are 0)
    w_mid_ref: (5, Lp, Lp)   bf16  [ew2, ew3, [wmu|wlv], dw1 duplicated, dw2]
    w_out_ref: (Lp, Po)      bf16  dw3 placed at cols [2L, 2L+D)
    b_mid_ref: (6, Lp)       f32   [eb1, eb2, eb3, [bmu|blv], db1, db2]
    b_out_ref: (1, Po)       f32   db3 placed at cols [2L, 2L+D)
    out_ref : (TB, Po)       f32   [ mu | logvar | decoded | 0 ] lane-dense slab
    """
    f32, bf16 = jnp.float32, jnp.bfloat16
    D, L = input_dim, latent_dim
    Lp = w_mid_ref.shape[-1]
    Po = out_ref.shape[-1]
    TB = x_ref.shape[0]

    b_mid = b_mid_ref[...]                                    # (6, Lp), tiny

    def dense(a, w, b_row, relu):
        y = jnp.dot(a.astype(bf16), w, preferred_element_type=f32) + b_row
        return jnp.maximum(y, 0.0) if relu else y

    # ---------------- encoder: Linear+ReLU, Linear+ReLU, Linear ----------------
    h = dense(x_ref[...], w_in_ref[...], b_mid[0:1, :], True)
    h = dense(h, w_mid_ref[0], b_mid[1:2, :], True)
    h = dense(h, w_mid_ref[1], b_mid[2:3, :], False)

    # fused mu/logvar head: cols [0,L)=mu, [L,2L)=logvar, rest exactly 0
    heads = dense(h, w_mid_ref[2], b_mid[3:4, :], False)      # (TB, Lp) f32

    # ------------- reparameterize (full-width, no sub-lane slices) -------------
    lane = jax.lax.broadcasted_iota(jnp.int32, (TB, Lp), 1)
    is_mu = lane < L
    is_lv = jnp.logical_and(lane >= L, lane < 2 * L)
    # std lives in the logvar lanes; mask keeps every other lane finite/zero.
    std = jnp.where(is_lv, jnp.exp(0.5 * heads), 0.0)
    eps = eps_ref[...].astype(f32)                            # (TB, L)
    pieces = [jnp.zeros((TB, L), f32), eps]
    if Lp > 2 * L:
        pieces.append(jnp.zeros((TB, Lp - 2 * L), f32))
    eps_lv = jnp.concatenate(pieces, axis=-1)                 # eps aligned with logvar lanes
    # zz = [ mu | eps*std | 0 ].  dw1 is packed duplicated over rows [0,L) and
    # [L,2L), so zz @ dw1_dup == (mu + eps*std) @ dw1 with no lane rotation.
    zz = jnp.where(is_mu, heads, 0.0) + eps_lv * std

    # ---------------- decoder: Linear+ReLU, Linear+ReLU, Linear ----------------
    d = dense(zz, w_mid_ref[3], b_mid[4:5, :], True)
    d = dense(d, w_mid_ref[4], b_mid[5:6, :], True)
    dec = dense(d, w_out_ref[...], b_out_ref[...], False)     # decoded at cols [2L, 2L+D)

    # -------- single lane-dense output slab: [ mu | logvar | decoded | 0 ] ------
    if Po > Lp:
        heads = jnp.concatenate([heads, jnp.zeros((TB, Po - Lp), f32)], axis=-1)
    out_ref[...] = dec + heads


# ----------------------------------------------------------------------------
# Parameter init (matches nn.Linear distribution; stored as (in, out))
# ----------------------------------------------------------------------------
def init_vae_params(key, input_dim, latent_dim):
    def linear(key, fan_in, fan_out):
        kw, kb = jax.random.split(key)
        bound = 1.0 / jnp.sqrt(jnp.float32(fan_in))
        w = jax.random.uniform(kw, (fan_in, fan_out), jnp.float32, -bound, bound)
        b = jax.random.uniform(kb, (1, fan_out), jnp.float32, -bound, bound)
        return w, b

    keys = jax.random.split(key, 8)
    params = {}
    params["ew1"], params["eb1"] = linear(keys[0], input_dim, latent_dim)
    params["ew2"], params["eb2"] = linear(keys[1], latent_dim, latent_dim)
    params["ew3"], params["eb3"] = linear(keys[2], latent_dim, latent_dim)
    params["wmu"], params["bmu"] = linear(keys[3], latent_dim, latent_dim)
    params["wlv"], params["blv"] = linear(keys[4], latent_dim, latent_dim)
    params["dw1"], params["db1"] = linear(keys[5], latent_dim, latent_dim)
    params["dw2"], params["db2"] = linear(keys[6], latent_dim, latent_dim)
    params["dw3"], params["db3"] = linear(keys[7], latent_dim, input_dim)
    return params


# ----------------------------------------------------------------------------
# Packing: per-layer shapes, bf16 weights, f32 biases
# ----------------------------------------------------------------------------
def pack_vae_params(params, input_dim, latent_dim):
    D, L = input_dim, latent_dim
    Lp = _round_up(2 * L, 128)                 # latent-side width
    Po = _round_up(D + 2 * L, 128)             # output slab width

    def pad2(w, rows, cols, r0=0, c0=0):
        out = jnp.zeros((rows, cols), jnp.float32)
        return out.at[r0:r0 + w.shape[0], c0:c0 + w.shape[1]].set(
            w.astype(jnp.float32))

    def pad1(b, n, c0=0):
        b = b.reshape(-1).astype(jnp.float32)
        out = jnp.zeros((n,), jnp.float32)
        return out.at[c0:c0 + b.shape[0]].set(b)

    # fused mu/logvar head: [wmu | wlv]
    wh = jnp.concatenate([params["wmu"], params["wlv"]], axis=1)          # (L, 2L)
    bh = jnp.concatenate([params["bmu"].reshape(-1),
                          params["blv"].reshape(-1)])                     # (2L,)

    # dw1 duplicated over rows [0,L) and [L,2L): [mu | eps*std] @ dw1_dup == z @ dw1
    dw1_dup = pad2(params["dw1"], Lp, Lp) + pad2(params["dw1"], Lp, Lp, r0=L)

    w_in = pad2(params["ew1"], D, Lp).astype(jnp.bfloat16)                # (D, Lp)
    w_mid = jnp.stack([
        pad2(params["ew2"], Lp, Lp),
        pad2(params["ew3"], Lp, Lp),
        pad2(wh, Lp, Lp),
        dw1_dup,
        pad2(params["dw2"], Lp, Lp),
    ]).astype(jnp.bfloat16)                                               # (5, Lp, Lp)
    # decoded goes straight into slab columns [2L, 2L+D)
    w_out = pad2(params["dw3"], Lp, Po, c0=2 * L).astype(jnp.bfloat16)    # (Lp, Po)

    b_mid = jnp.stack([pad1(params["eb1"], Lp), pad1(params["eb2"], Lp),
                       pad1(params["eb3"], Lp), pad1(bh, Lp),
                       pad1(params["db1"], Lp), pad1(params["db2"], Lp)]) # (6, Lp) f32
    b_out = pad1(params["db3"], Po, c0=2 * L).reshape(1, Po)              # (1, Po) f32
    return w_in, w_mid, w_out, b_mid, b_out


# ----------------------------------------------------------------------------
# Tile / VMEM-budget helpers
# ----------------------------------------------------------------------------
def _pick_batch_tile(batch):
    tb = min(512, _round_up(batch, 8))
    # For large batches keep >= 4 grid steps so the "parallel" batch axis can be
    # split across v7x's two TensorCores while each core still pipelines.
    if batch >= 256:
        tb = min(tb, _round_up(-(-batch // 4), 8))
    return max(tb, 8)


def _vmem_limit_bytes(TB, D, L, Lp, Po):
    weights = (D * Lp + 5 * Lp * Lp + Lp * Po) * 2 + (6 * Lp + Po) * 4
    io_tiles = 2 * (TB * D * 4 + TB * L * 4) + 2 * TB * Po * 4    # double-buffered
    temps = 10 * TB * Lp * 4
    est = weights + io_tiles + temps + (8 << 20)
    return int(max(32 << 20, min(est, 64 << 20)))


# ----------------------------------------------------------------------------
# Forward wrapper
# ----------------------------------------------------------------------------
@functools.partial(jax.jit,
                   static_argnames=("input_dim", "latent_dim", "single_buffer"))
def _vae_forward_impl(x, eps, w_in, w_mid, w_out, b_mid, b_out, *,
                      input_dim, latent_dim, single_buffer):
    D, L = input_dim, latent_dim
    Lp = w_mid.shape[-1]
    Po = b_out.shape[-1]
    batch = x.shape[0]

    TB = _pick_batch_tile(batch)
    padded_batch = _round_up(batch, TB)
    x = x.astype(jnp.float32)
    eps = eps.astype(jnp.float32)
    if padded_batch != batch:
        x = jnp.pad(x, ((0, padded_batch - batch), (0, 0)))
        eps = jnp.pad(eps, ((0, padded_batch - batch), (0, 0)))

    def const_spec(shape):
        idx = lambda i, _n=len(shape): (0,) * _n
        if single_buffer:
            # Constant index_map -> no need to double-buffer the weight blobs.
            return pl.BlockSpec(shape, idx,
                                pipeline_mode=pl.Buffered(buffer_count=1))
        return pl.BlockSpec(shape, idx)

    kernel = functools.partial(_vae_kernel, input_dim=D, latent_dim=L)

    out = pl.pallas_call(
        kernel,
        out_shape=jax.ShapeDtypeStruct((padded_batch, Po), jnp.float32),
        grid=(padded_batch // TB,),
        in_specs=[
            pl.BlockSpec((TB, D), lambda i: (i, 0)),      # x: tiled over batch
            pl.BlockSpec((TB, L), lambda i: (i, 0)),      # eps: tiled over batch
            const_spec(w_in.shape),                       # weights: VMEM-resident
            const_spec(w_mid.shape),
            const_spec(w_out.shape),
            const_spec(b_mid.shape),
            const_spec(b_out.shape),
        ],
        out_specs=pl.BlockSpec((TB, Po), lambda i: (i, 0)),
        compiler_params=pltpu.CompilerParams(
            dimension_semantics=("parallel",),            # batch axis -> megacore
            vmem_limit_bytes=_vmem_limit_bytes(TB, D, L, Lp, Po),
        ),
    )(x, eps, w_in, w_mid, w_out, b_mid, b_out)

    mu = out[:batch, 0:L]
    logvar = out[:batch, L:2 * L]
    decoded = out[:batch, 2 * L:2 * L + D]
    return decoded, mu, logvar


_single_buffer_ok = True


def vae_forward(x, eps, packed, *, input_dim, latent_dim):
    """packed = pack_vae_params(...) output tuple."""
    global _single_buffer_ok
    if _single_buffer_ok:
        try:
            return _vae_forward_impl(x, eps, *packed, input_dim=input_dim,
                                     latent_dim=latent_dim, single_buffer=True)
        except Exception:
            # pipeline_mode / Buffered(1) unsupported on this JAX build: fall back
            # to default double-buffering (correctness identical).
            _single_buffer_ok = False
    return _vae_forward_impl(x, eps, *packed, input_dim=input_dim,
                             latent_dim=latent_dim, single_buffer=False)


# ----------------------------------------------------------------------------
# Pure-JAX reference (mirrors the PyTorch forward exactly, f32)
# ----------------------------------------------------------------------------
def vae_forward_ref(x, eps, params):
    h = jnp.maximum(x @ params["ew1"] + params["eb1"], 0.0)
    h = jnp.maximum(h @ params["ew2"] + params["eb2"], 0.0)
    h = h @ params["ew3"] + params["eb3"]
    mu = h @ params["wmu"] + params["bmu"]
    logvar = h @ params["wlv"] + params["blv"]
    z = mu + eps * jnp.exp(0.5 * logvar)
    d = jnp.maximum(z @ params["dw1"] + params["db1"], 0.0)
    d = jnp.maximum(d @ params["dw2"] + params["db2"], 0.0)
    d = d @ params["dw3"] + params["db3"]
    return d, mu, logvar


if __name__ == "__main__":
    input_dim = 32
    latent_dim = 16
    batch = 8

    key = jax.random.PRNGKey(0)
    k_params, k_x, k_eps = jax.random.split(key, 3)

    params = init_vae_params(k_params, input_dim, latent_dim)
    x = jax.random.normal(k_x, (batch, input_dim), jnp.float32)
    # eps plays the role of torch.randn_like(std) in reparameterize()
    eps = jax.random.normal(k_eps, (batch, latent_dim), jnp.float32)

    # one-time parameter packing (bf16 weights, per-layer shapes)
    packed = pack_vae_params(params, input_dim, latent_dim)
    packed = jax.block_until_ready(packed)

    decoded, mu, logvar = vae_forward(x, eps, packed,
                                      input_dim=input_dim, latent_dim=latent_dim)
    jax.block_until_ready((decoded, mu, logvar))

    d_ref, mu_ref, lv_ref = vae_forward_ref(x, eps, params)
    # bf16 MXU operands (f32 accumulation) -> looser tolerance than pure f32
    assert jnp.allclose(mu, mu_ref, atol=5e-2, rtol=5e-2), "mu mismatch"
    assert jnp.allclose(logvar, lv_ref, atol=5e-2, rtol=5e-2), "logvar mismatch"
    assert jnp.allclose(decoded, d_ref, atol=5e-2, rtol=5e-2), "decoded mismatch"

    # second shape: exercises the batch-padding / tiling path
    batch2 = 10
    x2 = jax.random.normal(jax.random.PRNGKey(1), (batch2, input_dim), jnp.float32)
    eps2 = jax.random.normal(jax.random.PRNGKey(2), (batch2, latent_dim), jnp.float32)
    d2, mu2, lv2 = vae_forward(x2, eps2, packed,
                               input_dim=input_dim, latent_dim=latent_dim)
    jax.block_until_ready((d2, mu2, lv2))
    d2r, mu2r, lv2r = vae_forward_ref(x2, eps2, params)
    assert jnp.allclose(mu2, mu2r, atol=5e-2, rtol=5e-2), "mu mismatch (padded batch)"
    assert jnp.allclose(d2, d2r, atol=5e-2, rtol=5e-2), "decoded mismatch (padded batch)"

    print("KERNEL_OK")
</pallas_src>

<mosaic_0001>
module attributes {stable_mosaic.version = 11 : i64} {
  func.func @_vae_kernel(%arg0: i32, %arg1: memref<8x32xf32, #tpu.memory_space<vmem>>, %arg2: memref<8x16xf32, #tpu.memory_space<vmem>>, %arg3: memref<32x128xbf16, #tpu.memory_space<vmem>>, %arg4: memref<5x128x128xbf16, #tpu.memory_space<vmem>>, %arg5: memref<128x128xbf16, #tpu.memory_space<vmem>>, %arg6: memref<6x128xf32, #tpu.memory_space<vmem>>, %arg7: memref<1x128xf32, #tpu.memory_space<vmem>>, %arg8: memref<8x128xf32, #tpu.memory_space<vmem>>) attributes {dimension_semantics = [#tpu.dimension_semantics<parallel>], iteration_bounds = array<i64: 1>, scalar_prefetch = 0 : i64, scratch_operands = 0 : i64, tpu.core_type = #tpu.core_type<tc>, window_params = [{transform_indices = @transform_0, window_bounds = array<i64: 8, 32>}, {transform_indices = @transform_1, window_bounds = array<i64: 8, 16>}, {pipeline_mode = #tpu.pipeline_mode<synchronous>, transform_indices = @transform_2, window_bounds = array<i64: 32, 128>}, {pipeline_mode = #tpu.pipeline_mode<synchronous>, transform_indices = @transform_3, window_bounds = array<i64: 5, 128, 128>}, {pipeline_mode = #tpu.pipeline_mode<synchronous>, transform_indices = @transform_4, window_bounds = array<i64: 128, 128>}, {pipeline_mode = #tpu.pipeline_mode<synchronous>, transform_indices = @transform_5, window_bounds = array<i64: 6, 128>}, {pipeline_mode = #tpu.pipeline_mode<synchronous>, transform_indices = @transform_6, window_bounds = array<i64: 1, 128>}, {transform_indices = @transform_7, window_bounds = array<i64: 8, 128>}]} {
    %c0 = arith.constant 0 : index
    %c0_0 = arith.constant 0 : index
    %0 = vector.load %arg6[%c0, %c0_0] : memref<6x128xf32, #tpu.memory_space<vmem>>, vector<6x128xf32>
    %c0_1 = arith.constant 0 : index
    %c0_2 = arith.constant 0 : index
    %1 = vector.load %arg1[%c0_1, %c0_2] : memref<8x32xf32, #tpu.memory_space<vmem>>, vector<8x32xf32>
    %c0_3 = arith.constant 0 : index
    %c0_4 = arith.constant 0 : index
    %2 = vector.load %arg3[%c0_3, %c0_4] : memref<32x128xbf16, #tpu.memory_space<vmem>>, vector<32x128xbf16>
    %3 = vector.extract_strided_slice %0 {offsets = [0, 0], sizes = [1, 128], strides = [1, 1]} : vector<6x128xf32> to vector<1x128xf32>
    %4 = arith.truncf %1 : vector<8x32xf32> to vector<8x32xbf16>
    %cst = arith.constant dense<0.000000e+00> : vector<8x128xf32>
    %5 = tpu.matmul %4, %2, %cst {dimension_numbers = #tpu.dot_dimension_numbers<[1], [0], [0], [1], [0, 0, 1, 1], [], []>} : vector<8x32xbf16>, vector<32x128xbf16>, vector<8x128xf32> -> vector<8x128xf32>
    %6 = vector.broadcast %3 : vector<1x128xf32> to vector<8x128xf32>
    %7 = arith.addf %5, %6 : vector<8x128xf32>
    %cst_5 = arith.constant 0.000000e+00 : f32
    %8 = vector.broadcast %cst_5 : f32 to vector<8x128xf32>
    %9 = arith.maximumf %7, %8 : vector<8x128xf32>
    %c0_6 = arith.constant 0 : index
    %c0_7 = arith.constant 0 : index
    %c0_8 = arith.constant 0 : index
    %10 = vector.load %arg4[%c0_6, %c0_7, %c0_8] : memref<5x128x128xbf16, #tpu.memory_space<vmem>>, vector<1x128x128xbf16>
    %11 = vector.shape_cast %10 : vector<1x128x128xbf16> to vector<128x128xbf16>
    %12 = vector.extract_strided_slice %0 {offsets = [1, 0], sizes = [1, 128], strides = [1, 1]} : vector<6x128xf32> to vector<1x128xf32>
    %13 = arith.truncf %9 : vector<8x128xf32> to vector<8x128xbf16>
    %cst_9 = arith.constant dense<0.000000e+00> : vector<8x128xf32>
    %14 = tpu.matmul %13, %11, %cst_9 {dimension_numbers = #tpu.dot_dimension_numbers<[1], [0], [0], [1], [0, 0, 1, 1], [], []>} : vector<8x128xbf16>, vector<128x128xbf16>, vector<8x128xf32> -> vector<8x128xf32>
    %15 = vector.broadcast %12 : vector<1x128xf32> to vector<8x128xf32>
    %16 = arith.addf %14, %15 : vector<8x128xf32>
    %cst_10 = arith.constant 0.000000e+00 : f32
    %17 = vector.broadcast %cst_10 : f32 to vector<8x128xf32>
    %18 = arith.maximumf %16, %17 : vector<8x128xf32>
    %c1 = arith.constant 1 : index
    %c0_11 = arith.constant 0 : index
    %c0_12 = arith.constant 0 : index
    %19 = vector.load %arg4[%c1, %c0_11, %c0_12] : memref<5x128x128xbf16, #tpu.memory_space<vmem>>, vector<1x128x128xbf16>
    %20 = vector.shape_cast %19 : vector<1x128x128xbf16> to vector<128x128xbf16>
    %21 = vector.extract_strided_slice %0 {offsets = [2, 0], sizes = [1, 128], strides = [1, 1]} : vector<6x128xf32> to vector<1x128xf32>
    %22 = arith.truncf %18 : vector<8x128xf32> to vector<8x128xbf16>
    %cst_13 = arith.constant dense<0.000000e+00> : vector<8x128xf32>
    %23 = tpu.matmul %22, %20, %cst_13 {dimension_numbers = #tpu.dot_dimension_numbers<[1], [0], [0], [1], [0, 0, 1, 1], [], []>} : vector<8x128xbf16>, vector<128x128xbf16>, vector<8x128xf32> -> vector<8x128xf32>
    %24 = vector.broadcast %21 : vector<1x128xf32> to vector<8x128xf32>
    %25 = arith.addf %23, %24 : vector<8x128xf32>
    %c2 = arith.constant 2 : index
    %c0_14 = arith.constant 0 : index
    %c0_15 = arith.constant 0 : index
    %26 = vector.load %arg4[%c2, %c0_14, %c0_15] : memref<5x128x128xbf16, #tpu.memory_space<vmem>>, vector<1x128x128xbf16>
    %27 = vector.shape_cast %26 : vector<1x128x128xbf16> to vector<128x128xbf16>
    %28 = vector.extract_strided_slice %0 {offsets = [3, 0], sizes = [1, 128], strides = [1, 1]} : vector<6x128xf32> to vector<1x128xf32>
    %29 = arith.truncf %25 : vector<8x128xf32> to vector<8x128xbf16>
    %cst_16 = arith.constant dense<0.000000e+00> : vector<8x128xf32>
    %30 = tpu.matmul %29, %27, %cst_16 {dimension_numbers = #tpu.dot_dimension_numbers<[1], [0], [0], [1], [0, 0, 1, 1], [], []>} : vector<8x128xbf16>, vector<128x128xbf16>, vector<8x128xf32> -> vector<8x128xf32>
    %31 = vector.broadcast %28 : vector<1x128xf32> to vector<8x128xf32>
    %32 = arith.addf %30, %31 : vector<8x128xf32>
    %33 = tpu.iota {dimensions = array<i32: 1>} : vector<8x128xi32>
    %c16_i32 = arith.constant 16 : i32
    %34 = vector.broadcast %c16_i32 : i32 to vector<8x128xi32>
    %35 = arith.cmpi slt, %33, %34 : vector<8x128xi32>
    %c16_i32_17 = arith.constant 16 : i32
    %36 = vector.broadcast %c16_i32_17 : i32 to vector<8x128xi32>
    %37 = arith.cmpi sge, %33, %36 : vector<8x128xi32>
    %c32_i32 = arith.constant 32 : i32
    %38 = vector.broadcast %c32_i32 : i32 to vector<8x128xi32>
    %39 = arith.cmpi slt, %33, %38 : vector<8x128xi32>
    %40 = arith.andi %37, %39 : vector<8x128xi1>
    %cst_18 = arith.constant 5.000000e-01 : f32
    %41 = vector.broadcast %cst_18 : f32 to vector<8x128xf32>
    %42 = arith.mulf %41, %32 : vector<8x128xf32>
    %43 = math.exp %42 : vector<8x128xf32>
    %cst_19 = arith.constant 0.000000e+00 : f32
    %44 = vector.broadcast %cst_19 : f32 to vector<8x128xf32>
    %45 = arith.select %40, %43, %44 : vector<8x128xi1>, vector<8x128xf32>
    %c0_20 = arith.constant 0 : index
    %c0_21 = arith.constant 0 : index
    %46 = vector.load %arg2[%c0_20, %c0_21] : memref<8x16xf32, #tpu.memory_space<vmem>>, vector<8x16xf32>
    %cst_22 = arith.constant 0.000000e+00 : f32
    %47 = vector.broadcast %cst_22 : f32 to vector<8x16xf32>
    %cst_23 = arith.constant 0.000000e+00 : f32
    %48 = vector.broadcast %cst_23 : f32 to vector<8x96xf32>
    %49 = tpu.concatenate %47, %46, %48 in 1 : vector<8x16xf32>, vector<8x16xf32>, vector<8x96xf32> -> vector<8x128xf32>
    %cst_24 = arith.constant 0.000000e+00 : f32
    %50 = vector.broadcast %cst_24 : f32 to vector<8x128xf32>
    %51 = arith.select %35, %32, %50 : vector<8x128xi1>, vector<8x128xf32>
    %52 = arith.mulf %49, %45 : vector<8x128xf32>
    %53 = arith.addf %51, %52 : vector<8x128xf32>
    %c3 = arith.constant 3 : index
    %c0_25 = arith.constant 0 : index
    %c0_26 = arith.constant 0 : index
    %54 = vector.load %arg4[%c3, %c0_25, %c0_26] : memref<5x128x128xbf16, #tpu.memory_space<vmem>>, vector<1x128x128xbf16>
    %55 = vector.shape_cast %54 : vector<1x128x128xbf16> to vector<128x128xbf16>
    %56 = vector.extract_strided_slice %0 {offsets = [4, 0], sizes = [1, 128], strides = [1, 1]} : vector<6x128xf32> to vector<1x128xf32>
    %57 = arith.truncf %53 : vector<8x128xf32> to vector<8x128xbf16>
    %cst_27 = arith.constant dense<0.000000e+00> : vector<8x128xf32>
    %58 = tpu.matmul %57, %55, %cst_27 {dimension_numbers = #tpu.dot_dimension_numbers<[1], [0], [0], [1], [0, 0, 1, 1], [], []>} : vector<8x128xbf16>, vector<128x128xbf16>, vector<8x128xf32> -> vector<8x128xf32>
    %59 = vector.broadcast %56 : vector<1x128xf32> to vector<8x128xf32>
    %60 = arith.addf %58, %59 : vector<8x128xf32>
    %cst_28 = arith.constant 0.000000e+00 : f32
    %61 = vector.broadcast %cst_28 : f32 to vector<8x128xf32>
    %62 = arith.maximumf %60, %61 : vector<8x128xf32>
    %c4 = arith.constant 4 : index
    %c0_29 = arith.constant 0 : index
    %c0_30 = arith.constant 0 : index
    %63 = vector.load %arg4[%c4, %c0_29, %c0_30] : memref<5x128x128xbf16, #tpu.memory_space<vmem>>, vector<1x128x128xbf16>
    %64 = vector.shape_cast %63 : vector<1x128x128xbf16> to vector<128x128xbf16>
    %65 = vector.extract_strided_slice %0 {offsets = [5, 0], sizes = [1, 128], strides = [1, 1]} : vector<6x128xf32> to vector<1x128xf32>
    %66 = arith.truncf %62 : vector<8x128xf32> to vector<8x128xbf16>
    %cst_31 = arith.constant dense<0.000000e+00> : vector<8x128xf32>
    %67 = tpu.matmul %66, %64, %cst_31 {dimension_numbers = #tpu.dot_dimension_numbers<[1], [0], [0], [1], [0, 0, 1, 1], [], []>} : vector<8x128xbf16>, vector<128x128xbf16>, vector<8x128xf32> -> vector<8x128xf32>
    %68 = vector.broadcast %65 : vector<1x128xf32> to vector<8x128xf32>
    %69 = arith.addf %67, %68 : vector<8x128xf32>
    %cst_32 = arith.constant 0.000000e+00 : f32
    %70 = vector.broadcast %cst_32 : f32 to vector<8x128xf32>
    %71 = arith.maximumf %69, %70 : vector<8x128xf32>
    %c0_33 = arith.constant 0 : index
    %c0_34 = arith.constant 0 : index
    %72 = vector.load %arg5[%c0_33, %c0_34] : memref<128x128xbf16, #tpu.memory_space<vmem>>, vector<128x128xbf16>
    %c0_35 = arith.constant 0 : index
    %c0_36 = arith.constant 0 : index
    %73 = vector.load %arg7[%c0_35, %c0_36] : memref<1x128xf32, #tpu.memory_space<vmem>>, vector<1x128xf32>
    %74 = arith.truncf %71 : vector<8x128xf32> to vector<8x128xbf16>
    %cst_37 = arith.constant dense<0.000000e+00> : vector<8x128xf32>
    %75 = tpu.matmul %74, %72, %cst_37 {dimension_numbers = #tpu.dot_dimension_numbers<[1], [0], [0], [1], [0, 0, 1, 1], [], []>} : vector<8x128xbf16>, vector<128x128xbf16>, vector<8x128xf32> -> vector<8x128xf32>
    %76 = vector.broadcast %73 : vector<1x128xf32> to vector<8x128xf32>
    %77 = arith.addf %75, %76 : vector<8x128xf32>
    %78 = arith.addf %77, %32 : vector<8x128xf32>
    %c0_38 = arith.constant 0 : index
    %c0_39 = arith.constant 0 : index
    %79 = vector.load %arg8[%c0_38, %c0_39] : memref<8x128xf32, #tpu.memory_space<vmem>>, vector<8x128xf32>
    tpu.vector_store %arg8[%c0_38, %c0_39], %78 {strides = array<i32>} : memref<8x128xf32, #tpu.memory_space<vmem>>, vector<8x128xf32>,
    return
  }
  func.func @transform_0(%arg0: i32) -> (i32, i32) {
    %c0_i32 = arith.constant 0 : i32
    %c0_i32_0 = arith.constant 0 : i32
    return %arg0, %c0_i32 : i32, i32
  }
  func.func @transform_1(%arg0: i32) -> (i32, i32) {
    %c0_i32 = arith.constant 0 : i32
    %c0_i32_0 = arith.constant 0 : i32
    return %arg0, %c0_i32 : i32, i32
  }
  func.func @transform_2(%arg0: i32) -> (i32, i32) {
    %c0_i32 = arith.constant 0 : i32
    %c0_i32_0 = arith.constant 0 : i32
    %c0_i32_1 = arith.constant 0 : i32
    return %c0_i32, %c0_i32_0 : i32, i32
  }
  func.func @transform_3(%arg0: i32) -> (i32, i32, i32) {
    %c0_i32 = arith.constant 0 : i32
    %c0_i32_0 = arith.constant 0 : i32
    %c0_i32_1 = arith.constant 0 : i32
    %c0_i32_2 = arith.constant 0 : i32
    return %c0_i32, %c0_i32_0, %c0_i32_1 : i32, i32, i32
  }
  func.func @transform_4(%arg0: i32) -> (i32, i32) {
    %c0_i32 = arith.constant 0 : i32
    %c0_i32_0 = arith.constant 0 : i32
    %c0_i32_1 = arith.constant 0 : i32
    return %c0_i32, %c0_i32_0 : i32, i32
  }
  func.func @transform_5(%arg0: i32) -> (i32, i32) {
    %c0_i32 = arith.constant 0 : i32
    %c0_i32_0 = arith.constant 0 : i32
    %c0_i32_1 = arith.constant 0 : i32
    return %c0_i32, %c0_i32_0 : i32, i32
  }
  func.func @transform_6(%arg0: i32) -> (i32, i32) {
    %c0_i32 = arith.constant 0 : i32
    %c0_i32_0 = arith.constant 0 : i32
    %c0_i32_1 = arith.constant 0 : i32
    return %c0_i32, %c0_i32_0 : i32, i32
  }
  func.func @transform_7(%arg0: i32) -> (i32, i32) {
    %c0_i32 = arith.constant 0 : i32
    %c0_i32_0 = arith.constant 0 : i32
    return %arg0, %c0_i32 : i32, i32
  }
}

module attributes {stable_mosaic.version = 11 : i64} {
  func.func @_vae_kernel(%arg0: i32, %arg1: memref<8x32xf32, #tpu.memory_space<vmem>>, %arg2: memref<8x16xf32, #tpu.memory_space<vmem>>, %arg3: memref<32x128xbf16, #tpu.memory_space<vmem>>, %arg4: memref<5x128x128xbf16, #tpu.memory_space<vmem>>, %arg5: memref<128x128xbf16, #tpu.memory_space<vmem>>, %arg6: memref<6x128xf32, #tpu.memory_space<vmem>>, %arg7: memref<1x128xf32, #tpu.memory_space<vmem>>, %arg8: memref<8x128xf32, #tpu.memory_space<vmem>>) attributes {dimension_semantics = [#tpu.dimension_semantics<parallel>], iteration_bounds = array<i64: 1>, scalar_prefetch = 0 : i64, scratch_operands = 0 : i64, tpu.core_type = #tpu.core_type<tc>, window_params = [{transform_indices = @transform_0, window_bounds = array<i64: 8, 32>}, {transform_indices = @transform_1, window_bounds = array<i64: 8, 16>}, {pipeline_mode = #tpu.pipeline_mode<synchronous>, transform_indices = @transform_2, window_bounds = array<i64: 32, 128>}, {pipeline_mode = #tpu.pipeline_mode<synchronous>, transform_indices = @transform_3, window_bounds = array<i64: 5, 128, 128>}, {pipeline_mode = #tpu.pipeline_mode<synchronous>, transform_indices = @transform_4, window_bounds = array<i64: 128, 128>}, {pipeline_mode = #tpu.pipeline_mode<synchronous>, transform_indices = @transform_5, window_bounds = array<i64: 6, 128>}, {pipeline_mode = #tpu.pipeline_mode<synchronous>, transform_indices = @transform_6, window_bounds = array<i64: 1, 128>}, {transform_indices = @transform_7, window_bounds = array<i64: 8, 128>}]} {
    %c0 = arith.constant 0 : index
    %c0_0 = arith.constant 0 : index
    %0 = vector.load %arg6[%c0, %c0_0] : memref<6x128xf32, #tpu.memory_space<vmem>>, vector<6x128xf32>
    %c0_1 = arith.constant 0 : index
    %c0_2 = arith.constant 0 : index
    %1 = vector.load %arg1[%c0_1, %c0_2] : memref<8x32xf32, #tpu.memory_space<vmem>>, vector<8x32xf32>
    %c0_3 = arith.constant 0 : index
    %c0_4 = arith.constant 0 : index
    %2 = vector.load %arg3[%c0_3, %c0_4] : memref<32x128xbf16, #tpu.memory_space<vmem>>, vector<32x128xbf16>
    %3 = vector.extract_strided_slice %0 {offsets = [0, 0], sizes = [1, 128], strides = [1, 1]} : vector<6x128xf32> to vector<1x128xf32>
    %4 = arith.truncf %1 : vector<8x32xf32> to vector<8x32xbf16>
    %cst = arith.constant dense<0.000000e+00> : vector<8x128xf32>
    %5 = tpu.matmul %4, %2, %cst {dimension_numbers = #tpu.dot_dimension_numbers<[1], [0], [0], [1], [0, 0, 1, 1], [], []>} : vector<8x32xbf16>, vector<32x128xbf16>, vector<8x128xf32> -> vector<8x128xf32>
    %6 = vector.broadcast %3 : vector<1x128xf32> to vector<8x128xf32>
    %7 = arith.addf %5, %6 : vector<8x128xf32>
    %cst_5 = arith.constant 0.000000e+00 : f32
    %8 = vector.broadcast %cst_5 : f32 to vector<8x128xf32>
    %9 = arith.maximumf %7, %8 : vector<8x128xf32>
    %c0_6 = arith.constant 0 : index
    %c0_7 = arith.constant 0 : index
    %c0_8 = arith.constant 0 : index
    %10 = vector.load %arg4[%c0_6, %c0_7, %c0_8] : memref<5x128x128xbf16, #tpu.memory_space<vmem>>, vector<1x128x128xbf16>
    %11 = vector.shape_cast %10 : vector<1x128x128xbf16> to vector<128x128xbf16>
    %12 = vector.extract_strided_slice %0 {offsets = [1, 0], sizes = [1, 128], strides = [1, 1]} : vector<6x128xf32> to vector<1x128xf32>
    %13 = arith.truncf %9 : vector<8x128xf32> to vector<8x128xbf16>
    %cst_9 = arith.constant dense<0.000000e+00> : vector<8x128xf32>
    %14 = tpu.matmul %13, %11, %cst_9 {dimension_numbers = #tpu.dot_dimension_numbers<[1], [0], [0], [1], [0, 0, 1, 1], [], []>} : vector<8x128xbf16>, vector<128x128xbf16>, vector<8x128xf32> -> vector<8x128xf32>
    %15 = vector.broadcast %12 : vector<1x128xf32> to vector<8x128xf32>
    %16 = arith.addf %14, %15 : vector<8x128xf32>
    %cst_10 = arith.constant 0.000000e+00 : f32
    %17 = vector.broadcast %cst_10 : f32 to vector<8x128xf32>
    %18 = arith.maximumf %16, %17 : vector<8x128xf32>
    %c1 = arith.constant 1 : index
    %c0_11 = arith.constant 0 : index
    %c0_12 = arith.constant 0 : index
    %19 = vector.load %arg4[%c1, %c0_11, %c0_12] : memref<5x128x128xbf16, #tpu.memory_space<vmem>>, vector<1x128x128xbf16>
    %20 = vector.shape_cast %19 : vector<1x128x128xbf16> to vector<128x128xbf16>
    %21 = vector.extract_strided_slice %0 {offsets = [2, 0], sizes = [1, 128], strides = [1, 1]} : vector<6x128xf32> to vector<1x128xf32>
    %22 = arith.truncf %18 : vector<8x128xf32> to vector<8x128xbf16>
    %cst_13 = arith.constant dense<0.000000e+00> : vector<8x128xf32>
    %23 = tpu.matmul %22, %20, %cst_13 {dimension_numbers = #tpu.dot_dimension_numbers<[1], [0], [0], [1], [0, 0, 1, 1], [], []>} : vector<8x128xbf16>, vector<128x128xbf16>, vector<8x128xf32> -> vector<8x128xf32>
    %24 = vector.broadcast %21 : vector<1x128xf32> to vector<8x128xf32>
    %25 = arith.addf %23, %24 : vector<8x128xf32>
    %c2 = arith.constant 2 : index
    %c0_14 = arith.constant 0 : index
    %c0_15 = arith.constant 0 : index
    %26 = vector.load %arg4[%c2, %c0_14, %c0_15] : memref<5x128x128xbf16, #tpu.memory_space<vmem>>, vector<1x128x128xbf16>
    %27 = vector.shape_cast %26 : vector<1x128x128xbf16> to vector<128x128xbf16>
    %28 = vector.extract_strided_slice %0 {offsets = [3, 0], sizes = [1, 128], strides = [1, 1]} : vector<6x128xf32> to vector<1x128xf32>
    %29 = arith.truncf %25 : vector<8x128xf32> to vector<8x128xbf16>
    %cst_16 = arith.constant dense<0.000000e+00> : vector<8x128xf32>
    %30 = tpu.matmul %29, %27, %cst_16 {dimension_numbers = #tpu.dot_dimension_numbers<[1], [0], [0], [1], [0, 0, 1, 1], [], []>} : vector<8x128xbf16>, vector<128x128xbf16>, vector<8x128xf32> -> vector<8x128xf32>
    %31 = vector.broadcast %28 : vector<1x128xf32> to vector<8x128xf32>
    %32 = arith.addf %30, %31 : vector<8x128xf32>
    %33 = tpu.iota {dimensions = array<i32: 1>} : vector<8x128xi32>
    %c16_i32 = arith.constant 16 : i32
    %34 = vector.broadcast %c16_i32 : i32 to vector<8x128xi32>
    %35 = arith.cmpi slt, %33, %34 : vector<8x128xi32>
    %c16_i32_17 = arith.constant 16 : i32
    %36 = vector.broadcast %c16_i32_17 : i32 to vector<8x128xi32>
    %37 = arith.cmpi sge, %33, %36 : vector<8x128xi32>
    %c32_i32 = arith.constant 32 : i32
    %38 = vector.broadcast %c32_i32 : i32 to vector<8x128xi32>
    %39 = arith.cmpi slt, %33, %38 : vector<8x128xi32>
    %40 = arith.andi %37, %39 : vector<8x128xi1>
    %cst_18 = arith.constant 5.000000e-01 : f32
    %41 = vector.broadcast %cst_18 : f32 to vector<8x128xf32>
    %42 = arith.mulf %41, %32 : vector<8x128xf32>
    %43 = math.exp %42 : vector<8x128xf32>
    %cst_19 = arith.constant 0.000000e+00 : f32
    %44 = vector.broadcast %cst_19 : f32 to vector<8x128xf32>
    %45 = arith.select %40, %43, %44 : vector<8x128xi1>, vector<8x128xf32>
    %c0_20 = arith.constant 0 : index
    %c0_21 = arith.constant 0 : index
    %46 = vector.load %arg2[%c0_20, %c0_21] : memref<8x16xf32, #tpu.memory_space<vmem>>, vector<8x16xf32>
    %cst_22 = arith.constant 0.000000e+00 : f32
    %47 = vector.broadcast %cst_22 : f32 to vector<8x16xf32>
    %cst_23 = arith.constant 0.000000e+00 : f32
    %48 = vector.broadcast %cst_23 : f32 to vector<8x96xf32>
    %49 = tpu.concatenate %47, %46, %48 in 1 : vector<8x16xf32>, vector<8x16xf32>, vector<8x96xf32> -> vector<8x128xf32>
    %cst_24 = arith.constant 0.000000e+00 : f32
    %50 = vector.broadcast %cst_24 : f32 to vector<8x128xf32>
    %51 = arith.select %35, %32, %50 : vector<8x128xi1>, vector<8x128xf32>
    %52 = arith.mulf %49, %45 : vector<8x128xf32>
    %53 = arith.addf %51, %52 : vector<8x128xf32>
    %c3 = arith.constant 3 : index
    %c0_25 = arith.constant 0 : index
    %c0_26 = arith.constant 0 : index
    %54 = vector.load %arg4[%c3, %c0_25, %c0_26] : memref<5x128x128xbf16, #tpu.memory_space<vmem>>, vector<1x128x128xbf16>
    %55 = vector.shape_cast %54 : vector<1x128x128xbf16> to vector<128x128xbf16>
    %56 = vector.extract_strided_slice %0 {offsets = [4, 0], sizes = [1, 128], strides = [1, 1]} : vector<6x128xf32> to vector<1x128xf32>
    %57 = arith.truncf %53 : vector<8x128xf32> to vector<8x128xbf16>
    %cst_27 = arith.constant dense<0.000000e+00> : vector<8x128xf32>
    %58 = tpu.matmul %57, %55, %cst_27 {dimension_numbers = #tpu.dot_dimension_numbers<[1], [0], [0], [1], [0, 0, 1, 1], [], []>} : vector<8x128xbf16>, vector<128x128xbf16>, vector<8x128xf32> -> vector<8x128xf32>
    %59 = vector.broadcast %56 : vector<1x128xf32> to vector<8x128xf32>
    %60 = arith.addf %58, %59 : vector<8x128xf32>
    %cst_28 = arith.constant 0.000000e+00 : f32
    %61 = vector.broadcast %cst_28 : f32 to vector<8x128xf32>
    %62 = arith.maximumf %60, %61 : vector<8x128xf32>
    %c4 = arith.constant 4 : index
    %c0_29 = arith.constant 0 : index
    %c0_30 = arith.constant 0 : index
    %63 = vector.load %arg4[%c4, %c0_29, %c0_30] : memref<5x128x128xbf16, #tpu.memory_space<vmem>>, vector<1x128x128xbf16>
    %64 = vector.shape_cast %63 : vector<1x128x128xbf16> to vector<128x128xbf16>
    %65 = vector.extract_strided_slice %0 {offsets = [5, 0], sizes = [1, 128], strides = [1, 1]} : vector<6x128xf32> to vector<1x128xf32>
    %66 = arith.truncf %62 : vector<8x128xf32> to vector<8x128xbf16>
    %cst_31 = arith.constant dense<0.000000e+00> : vector<8x128xf32>
    %67 = tpu.matmul %66, %64, %cst_31 {dimension_numbers = #tpu.dot_dimension_numbers<[1], [0], [0], [1], [0, 0, 1, 1], [], []>} : vector<8x128xbf16>, vector<128x128xbf16>, vector<8x128xf32> -> vector<8x128xf32>
    %68 = vector.broadcast %65 : vector<1x128xf32> to vector<8x128xf32>
    %69 = arith.addf %67, %68 : vector<8x128xf32>
    %cst_32 = arith.constant 0.000000e+00 : f32
    %70 = vector.broadcast %cst_32 : f32 to vector<8x128xf32>
    %71 = arith.maximumf %69, %70 : vector<8x128xf32>
    %c0_33 = arith.constant 0 : index
    %c0_34 = arith.constant 0 : index
    %72 = vector.load %arg5[%c0_33, %c0_34] : memref<128x128xbf16, #tpu.memory_space<vmem>>, vector<128x128xbf16>
    %c0_35 = arith.constant 0 : index
    %c0_36 = arith.constant 0 : index
    %73 = vector.load %arg7[%c0_35, %c0_36] : memref<1x128xf32, #tpu.memory_space<vmem>>, vector<1x128xf32>
    %74 = arith.truncf %71 : vector<8x128xf32> to vector<8x128xbf16>
    %cst_37 = arith.constant dense<0.000000e+00> : vector<8x128xf32>
    %75 = tpu.matmul %74, %72, %cst_37 {dimension_numbers = #tpu.dot_dimension_numbers<[1], [0], [0], [1], [0, 0, 1, 1], [], []>} : vector<8x128xbf16>, vector<128x128xbf16>, vector<8x128xf32> -> vector<8x128xf32>
    %76 = vector.broadcast %73 : vector<1x128xf32> to vector<8x128xf32>
    %77 = arith.addf %75, %76 : vector<8x128xf32>
    %78 = arith.addf %77, %32 : vector<8x128xf32>
    %c0_38 = arith.constant 0 : index
    %c0_39 = arith.constant 0 : index
    %79 = vector.load %arg8[%c0_38, %c0_39] : memref<8x128xf32, #tpu.memory_space<vmem>>, vector<8x128xf32>
    tpu.vector_store %arg8[%c0_38, %c0_39], %78 {strides = array<i32>} : memref<8x128xf32, #tpu.memory_space<vmem>>, vector<8x128xf32>,
    return
  }
  func.func @transform_0(%arg0: i32) -> (i32, i32) {
    %c0_i32 = arith.constant 0 : i32
    %c0_i32_0 = arith.constant 0 : i32
    return %arg0, %c0_i32 : i32, i32
  }
  func.func @transform_1(%arg0: i32) -> (i32, i32) {
    %c0_i32 = arith.constant 0 : i32
    %c0_i32_0 = arith.constant 0 : i32
    return %arg0, %c0_i32 : i32, i32
  }
  func.func @transform_2(%arg0: i32) -> (i32, i32) {
    %c0_i32 = arith.constant 0 : i32
    %c0_i32_0 = arith.constant 0 : i32
    %c0_i32_1 = arith.constant 0 : i32
    return %c0_i32, %c0_i32_0 : i32, i32
  }
  func.func @transform_3(%arg0: i32) -> (i32, i32, i32) {
    %c0_i32 = arith.constant 0 : i32
    %c0_i32_0 = arith.constant 0 : i32
    %c0_i32_1 = arith.constant 0 : i32
    %c0_i32_2 = arith.constant 0 : i32
    return %c0_i32, %c0_i32_0, %c0_i32_1 : i32, i32, i32
  }
  func.func @transform_4(%arg0: i32) -> (i32, i32) {
    %c0_i32 = arith.constant 0 : i32
    %c0_i32_0 = arith.constant 0 : i32
    %c0_i32_1 = arith.constant 0 : i32
    return %c0_i32, %c0_i32_0 : i32, i32
  }
  func.func @transform_5(%arg0: i32) -> (i32, i32) {
    %c0_i32 = arith.constant 0 : i32
    %c0_i32_0 = arith.constant 0 : i32
    %c0_i32_1 = arith.constant 0 : i32
    return %c0_i32, %c0_i32_0 : i32, i32
  }
  func.func @transform_6(%arg0: i32) -> (i32, i32) {
    %c0_i32 = arith.constant 0 : i32
    %c0_i32_0 = arith.constant 0 : i32
    %c0_i32_1 = arith.constant 0 : i32
    return %c0_i32, %c0_i32_0 : i32, i32
  }
  func.func @transform_7(%arg0: i32) -> (i32, i32) {
    %c0_i32 = arith.constant 0 : i32
    %c0_i32_0 = arith.constant 0 : i32
    return %arg0, %c0_i32 : i32, i32
  }
}

</mosaic_0001>

<llo_original>
// kernel: _vae_forward_impl.1
$region0: #{_vae_forward_impl.1}
  #allocation0 [shape = 'u32[]', space=smem, size = 0x4, offset = 0x4, fixed_abs, tag = 'smem constant byte address 0x4 - core index']
  #allocation1 [shape = 'u32[72,128]{1,0:T(1,128)}', space=vmem, size = 0x9000, scoped, tag = 'internal scratch']
  %s0 = inlined_call_operand.hbm [shape: f32[8,32], index: 0, kind: input, shape index: {}]
  %s1 = inlined_call_operand.hbm [shape: f32[8,16], index: 1, kind: input, shape index: {}]
  %s2 = inlined_call_operand.hbm [shape: bf16[32,128], index: 2, kind: input, shape index: {}]
  %s3 = inlined_call_operand.hbm [shape: bf16[5,128,128], index: 3, kind: input, shape index: {}]
  %s4 = inlined_call_operand.hbm [shape: bf16[128,128], index: 4, kind: input, shape index: {}]
  %s5 = inlined_call_operand.hbm [shape: f32[6,128], index: 5, kind: input, shape index: {}]
  %s6 = inlined_call_operand.vmem [shape: f32[1,128], index: 6, kind: input, shape index: {}]
  %s7 = inlined_call_operand.vmem [shape: f32[8,128], index: 7, kind: output, shape index: {}]
  %s8 = sld [smem:[#allocation0]]
  $region62: #{_vae_forward_impl.1} parent=0
    _
  %s10 = ssub.s32 1, %s8
  %s11 = scalar_select 0, %s10, %s8
  $region1: #{_vae_forward_impl.1} parent=0
    #allocation2 [shape = 'u8[4096]{0}', space=vmem, size = 0x1000, scoped, tag = 'input window, operand 0, single buffered']
    #allocation3 [shape = 's32[1]{0}', space=sflag, size = 0x4, scoped, tag = 'scoped memory for _vae_forward_impl.1']
    #allocation4 [shape = 'u8[4096]{0}', space=vmem, size = 0x1000, scoped, tag = 'input window, operand 1, single buffered']
    #allocation5 [shape = 's32[1]{0}', space=sflag, size = 0x4, scoped, tag = 'scoped memory for _vae_forward_impl.1']
    #allocation6 [shape = 'u8[8192]{0}', space=vmem, size = 0x2000, scoped, tag = 'input window, operand 2, single buffered']
    #allocation7 [shape = 'u8[163840]{0}', space=vmem, size = 0x28000, scoped, tag = 'input window, operand 3, single buffered']
    #allocation8 [shape = 's32[1]{0}', space=sflag, size = 0x4, scoped, tag = 'scoped memory for _vae_forward_impl.1']
    #allocation9 [shape = 'u8[32768]{0}', space=vmem, size = 0x8000, scoped, tag = 'input window, operand 4, single buffered']
    #allocation10 [shape = 'u8[4096]{0}', space=vmem, size = 0x1000, scoped, tag = 'input window, operand 5, single buffered']
    #allocation11 [shape = 's32[1]{0}', space=sflag, size = 0x4, scoped, tag = 'scoped memory for _vae_forward_impl.1']
    %12 = vsyncpa [#allocation3], 0
    %13 = vsyncpa [#allocation5], 0
    %14 = vsyncpa [#allocation8], 0
    %15 = vsyncpa [#allocation11], 0
    // Predicated region
    $region2: #{_vae_forward_impl.1} parent=1 // pred_check
      _
    $region3: #{_vae_forward_impl.1} parent=1 // pred_check_branch
      %17 = sbr.rel (0) target = $region5
    $region4: #{_vae_forward_impl.1} parent=1 // pred_region
      %19 = vsyncadd [#allocation3], 0
      %s21 = sshll.u32 %s0, 4
      %s22 = int_to_ptr.hbm [resolvable:$true] %s21
      %s23 = sshll.u32 [#allocation2], 4
      %s24 = int_to_ptr.vmem [resolvable:$true] %s23
      %26 = dma.hbm_to_vmem [thread:$0]  %s22, 128, %s24, [#allocation3]
    $region5: #{_vae_forward_impl.1} parent=1 // pred_fallthru
      _
    // Predicated region
    $region6: #{_vae_forward_impl.1} parent=1 // pred_check
      _
    $region7: #{_vae_forward_impl.1} parent=1 // pred_check_branch
      %28 = sbr.rel (0) target = $region9
    $region8: #{_vae_forward_impl.1} parent=1 // pred_region
      %30 = vsyncadd [#allocation5], 0
      %s32 = sshll.u32 %s1, 4
      %s33 = int_to_ptr.hbm [resolvable:$true] %s32
      %s34 = sshll.u32 [#allocation4], 4
      %s35 = int_to_ptr.vmem [resolvable:$true] %s34
      %37 = dma.hbm_to_vmem [thread:$0]  %s33, 128, %s35, [#allocation5]
    $region9: #{_vae_forward_impl.1} parent=1 // pred_fallthru
      _
    // Predicated region
    $region10: #{_vae_forward_impl.1} parent=1 // pred_check
      _
    $region11: #{_vae_forward_impl.1} parent=1 // pred_check_branch
      %39 = sbr.rel (0) target = $region13
    $region12: #{_vae_forward_impl.1} parent=1 // pred_region
      %41 = vsyncadd [#allocation5], 0
      %s42 = sshll.u32 %s2, 4
      %s43 = int_to_ptr.hbm [resolvable:$true] %s42
      %s44 = sshll.u32 [#allocation6], 4
      %s45 = int_to_ptr.vmem [resolvable:$true] %s44
      %50 = dma.hbm_to_vmem [thread:$0]  %s43, 256, %s45, [#allocation5], 64, 64, 4
    $region13: #{_vae_forward_impl.1} parent=1 // pred_fallthru
      _
    // Predicated region
    $region14: #{_vae_forward_impl.1} parent=1 // pred_check
      _
    $region15: #{_vae_forward_impl.1} parent=1 // pred_check_branch
      %52 = sbr.rel (0) target = $region17
    $region16: #{_vae_forward_impl.1} parent=1 // pred_region
      %54 = vsyncadd [#allocation8], 0
      %s55 = sshll.u32 %s3, 4
      %s56 = int_to_ptr.hbm [resolvable:$true] %s55
      %s57 = sshll.u32 [#allocation7], 4
      %s58 = int_to_ptr.vmem [resolvable:$true] %s57
      %63 = dma.hbm_to_vmem [thread:$0]  %s56, 5120, %s58, [#allocation8], 64, 64, 4
    $region17: #{_vae_forward_impl.1} parent=1 // pred_fallthru
      _
    // Predicated region
    $region18: #{_vae_forward_impl.1} parent=1 // pred_check
      _
    $region19: #{_vae_forward_impl.1} parent=1 // pred_check_branch
      %65 = sbr.rel (0) target = $region21
    $region20: #{_vae_forward_impl.1} parent=1 // pred_region
      %67 = vsyncadd [#allocation8], 0
      %s68 = sshll.u32 %s4, 4
      %s69 = int_to_ptr.hbm [resolvable:$true] %s68
      %s70 = sshll.u32 [#allocation9], 4
      %s71 = int_to_ptr.vmem [resolvable:$true] %s70
      %76 = dma.hbm_to_vmem [thread:$0]  %s69, 1024, %s71, [#allocation8], 64, 64, 4
    $region21: #{_vae_forward_impl.1} parent=1 // pred_fallthru
      _
    // Predicated region
    $region22: #{_vae_forward_impl.1} parent=1 // pred_check
      _
    $region23: #{_vae_forward_impl.1} parent=1 // pred_check_branch
      %78 = sbr.rel (0) target = $region25
    $region24: #{_vae_forward_impl.1} parent=1 // pred_region
      %80 = vsyncadd [#allocation11], 0
      %s82 = sshll.u32 %s5, 4
      %s83 = int_to_ptr.hbm [resolvable:$true] %s82
      %s84 = sshll.u32 [#allocation10], 4
      %s85 = int_to_ptr.vmem [resolvable:$true] %s84
      %87 = dma.hbm_to_vmem [thread:$0]  %s83, 128, %s85, [#allocation11]
    $region25: #{_vae_forward_impl.1} parent=1 // pred_fallthru
      _
    // Predicated region
    $region26: #{_vae_forward_impl.1} parent=1 // pred_check
      _
    $region27: #{_vae_forward_impl.1} parent=1 // pred_check_branch
      %89 = sbr.rel (0) target = $region29
    $region28: #{_vae_forward_impl.1} parent=1 // pred_region
      _
    $region29: #{_vae_forward_impl.1} parent=1 // pred_fallthru
      _
    // Predicated region
    $region30: #{_vae_forward_impl.1} parent=1 // pred_check
      _
    $region31: #{_vae_forward_impl.1} parent=1 // pred_check_branch
      %91 = sbr.rel (0) target = $region33
    $region32: #{_vae_forward_impl.1} parent=1 // pred_region
      %93 = dma.done [#allocation3], 128
    $region33: #{_vae_forward_impl.1} parent=1 // pred_fallthru
      _
    // Predicated region
    $region34: #{_vae_forward_impl.1} parent=1 // pred_check
      _
    $region35: #{_vae_forward_impl.1} parent=1 // pred_check_branch
      %95 = sbr.rel (0) target = $region37
    $region36: #{_vae_forward_impl.1} parent=1 // pred_region
      %97 = dma.done [#allocation5], 128
    $region37: #{_vae_forward_impl.1} parent=1 // pred_fallthru
      _
    // Predicated region
    $region38: #{_vae_forward_impl.1} parent=1 // pred_check
      _
    $region39: #{_vae_forward_impl.1} parent=1 // pred_check_branch
      %99 = sbr.rel (0) target = $region41
    $region40: #{_vae_forward_impl.1} parent=1 // pred_region
      %101 = dma.done [#allocation5], 256
    $region41: #{_vae_forward_impl.1} parent=1 // pred_fallthru
      _
    // Predicated region
    $region42: #{_vae_forward_impl.1} parent=1 // pred_check
      _
    $region43: #{_vae_forward_impl.1} parent=1 // pred_check_branch
      %103 = sbr.rel (0) target = $region45
    $region44: #{_vae_forward_impl.1} parent=1 // pred_region
      %105 = dma.done [#allocation8], 5120
    $region45: #{_vae_forward_impl.1} parent=1 // pred_fallthru
      _
    // Predicated region
    $region46: #{_vae_forward_impl.1} parent=1 // pred_check
      _
    $region47: #{_vae_forward_impl.1} parent=1 // pred_check_branch
      %107 = sbr.rel (0) target = $region49
    $region48: #{_vae_forward_impl.1} parent=1 // pred_region
      %109 = dma.done [#allocation8], 1024
    $region49: #{_vae_forward_impl.1} parent=1 // pred_fallthru
      _
    // Predicated region
    $region50: #{_vae_forward_impl.1} parent=1 // pred_check
      _
    $region51: #{_vae_forward_impl.1} parent=1 // pred_check_branch
      %111 = sbr.rel (0) target = $region53
    $region52: #{_vae_forward_impl.1} parent=1 // pred_region
      %113 = dma.done [#allocation11], 128
    $region53: #{_vae_forward_impl.1} parent=1 // pred_fallthru
      _
    %v115 = vld [vmem:[#allocation10] sm:$0x3f]
    %v116 = vld [vmem:[#allocation2] sm:$0xff]
    %v117 = vld [vmem:[#allocation6] sm:$0xf]
    %v118 = vld [vmem:[#allocation6 + $0x4] sm:$0xf]
    %v119 = vld [vmem:[#allocation6 + $0x8] sm:$0xf]
    %v120 = vld [vmem:[#allocation6 + $0xc] sm:$0xf]
    %v121 = vpack.c.bf16 %v116, %v116
    %v122 = vperm.slane %v115, 0
    %v127 = vunpack.c.l.b16 %v117
    %v128 = vunpack.c.l.b16 %v118
    %v129 = vunpack.c.l.b16 %v119
    %v130 = vunpack.c.l.b16 %v120
    %v131 = vpack.c.b16 %v128, %v127
    %v132 = vpack.c.b16 %v130, %v129
    %vm135 = vcmask 261120
    %v137 = vsel %vm135, %v121, 0
    %139 = vmatpush.bf16.msra.mxu0 0
    %140 = vmatpush.bf16.msra.mxu0 0
    %141 = vmatpush.bf16.msra.mxu0 0
    %142 = vmatpush.bf16.msra.mxu0 0
    %143 = vmatpush.bf16.msra.mxu0 0
    %144 = vmatpush.bf16.msra.mxu0 0
    %145 = vmatpush.bf16.msra.mxu0 %v132
    %146 = vmatpush.bf16.msra.mxu0 %v131
    %147 = vmatmul.bf16.gmra.mxu0 %v137
    %v148 = vpop.f32.mrf.mxu0
    %v149 = vadd.f32 %v122, %v148
    %v150 = vpop.f32.mrf.mxu0
    %151 = vdwg.mxu0
    %v152 = vmax.f32 %v149, 0.0
    %v153 = vld [vmem:[#allocation7] sm:$0xf]
    %v154 = vld [vmem:[#allocation7 + $0x4] sm:$0xf]
    %v155 = vld [vmem:[#allocation7 + $0x8] sm:$0xf]
    %v156 = vld [vmem:[#allocation7 + $0xc] sm:$0xf]
    %v157 = vld [vmem:[#allocation7 + $0x10] sm:$0xf]
    %v158 = vld [vmem:[#allocation7 + $0x14] sm:$0xf]
    %v159 = vld [vmem:[#allocation7 + $0x18] sm:$0xf]
    %v160 = vld [vmem:[#allocation7 + $0x1c] sm:$0xf]
    %v161 = vld [vmem:[#allocation7 + $0x20] sm:$0xf]
    %v162 = vld [vmem:[#allocation7 + $0x24] sm:$0xf]
    %v163 = vld [vmem:[#allocation7 + $0x28] sm:$0xf]
    %v164 = vld [vmem:[#allocation7 + $0x2c] sm:$0xf]
    %v165 = vld [vmem:[#allocation7 + $0x30] sm:$0xf]
    %v166 = vld [vmem:[#allocation7 + $0x34] sm:$0xf]
    %v167 = vld [vmem:[#allocation7 + $0x38] sm:$0xf]
    %v168 = vld [vmem:[#allocation7 + $0x3c] sm:$0xf]
    %v169 = vpack.c.bf16 %v152, %v152
    %v170 = vperm.slane %v115, 1
    %v187 = vunpack.c.l.b16 %v153
    %v188 = vunpack.c.l.b16 %v154
    %v189 = vunpack.c.l.b16 %v155
    %v190 = vunpack.c.l.b16 %v156
    %v191 = vunpack.c.l.b16 %v157
    %v192 = vunpack.c.l.b16 %v158
    %v193 = vunpack.c.l.b16 %v159
    %v194 = vunpack.c.l.b16 %v160
    %v195 = vunpack.c.l.b16 %v161
    %v196 = vunpack.c.l.b16 %v162
    %v197 = vunpack.c.l.b16 %v163
    %v198 = vunpack.c.l.b16 %v164
    %v199 = vunpack.c.l.b16 %v165
    %v200 = vunpack.c.l.b16 %v166
    %v201 = vunpack.c.l.b16 %v167
    %v202 = vunpack.c.l.b16 %v168
    %v203 = vpack.c.b16 %v188, %v187
    %v204 = vpack.c.b16 %v190, %v189
    %v205 = vpack.c.b16 %v192, %v191
    %v206 = vpack.c.b16 %v194, %v193
    %v207 = vpack.c.b16 %v196, %v195
    %v208 = vpack.c.b16 %v198, %v197
    %v209 = vpack.c.b16 %v200, %v199
    %v210 = vpack.c.b16 %v202, %v201
    %219 = vmatpush.bf16.msra.mxu0 %v210
    %220 = vmatpush.bf16.msra.mxu0 %v209
    %221 = vmatpush.bf16.msra.mxu0 %v208
    %222 = vmatpush.bf16.msra.mxu0 %v207
    %223 = vmatpush.bf16.msra.mxu0 %v206
    %224 = vmatpush.bf16.msra.mxu0 %v205
    %225 = vmatpush.bf16.msra.mxu0 %v204
    %226 = vmatpush.bf16.msra.mxu0 %v203
    %227 = vmatmul.bf16.gmra.mxu0 %v169
    %v228 = vpop.f32.mrf.mxu0
    %v229 = vadd.f32 %v170, %v228
    %v230 = vpop.f32.mrf.mxu0
    %231 = vdwg.mxu0
    %v232 = vmax.f32 %v229, 0.0
    %s233 = scalar_lea.vmem [#allocation7], 64
    %v234 = vld [vmem:[%s233] sm:$0xf]
    %v235 = vld [vmem:[%s233 + $0x4] sm:$0xf]
    %v236 = vld [vmem:[%s233 + $0x8] sm:$0xf]
    %v237 = vld [vmem:[%s233 + $0xc] sm:$0xf]
    %v238 = vld [vmem:[%s233 + $0x10] sm:$0xf]
    %v239 = vld [vmem:[%s233 + $0x14] sm:$0xf]
    %v240 = vld [vmem:[%s233 + $0x18] sm:$0xf]
    %v241 = vld [vmem:[%s233 + $0x1c] sm:$0xf]
    %v242 = vld [vmem:[%s233 + $0x20] sm:$0xf]
    %v243 = vld [vmem:[%s233 + $0x24] sm:$0xf]
    %v244 = vld [vmem:[%s233 + $0x28] sm:$0xf]
    %v245 = vld [vmem:[%s233 + $0x2c] sm:$0xf]
    %v246 = vld [vmem:[%s233 + $0x30] sm:$0xf]
    %v247 = vld [vmem:[%s233 + $0x34] sm:$0xf]
    %v248 = vld [vmem:[%s233 + $0x38] sm:$0xf]
    %v249 = vld [vmem:[%s233 + $0x3c] sm:$0xf]
    %v250 = vpack.c.bf16 %v232, %v232
    %v251 = vperm.slane %v115, 2
    %v268 = vunpack.c.l.b16 %v234
    %v269 = vunpack.c.l.b16 %v235
    %v270 = vunpack.c.l.b16 %v236
    %v271 = vunpack.c.l.b16 %v237
    %v272 = vunpack.c.l.b16 %v238
    %v273 = vunpack.c.l.b16 %v239
    %v274 = vunpack.c.l.b16 %v240
    %v275 = vunpack.c.l.b16 %v241
    %v276 = vunpack.c.l.b16 %v242
    %v277 = vunpack.c.l.b16 %v243
    %v278 = vunpack.c.l.b16 %v244
    %v279 = vunpack.c.l.b16 %v245
    %v280 = vunpack.c.l.b16 %v246
    %v281 = vunpack.c.l.b16 %v247
    %v282 = vunpack.c.l.b16 %v248
    %v283 = vunpack.c.l.b16 %v249
    %v284 = vpack.c.b16 %v269, %v268
    %v285 = vpack.c.b16 %v271, %v270
    %v286 = vpack.c.b16 %v273, %v272
    %v287 = vpack.c.b16 %v275, %v274
    %v288 = vpack.c.b16 %v277, %v276
    %v289 = vpack.c.b16 %v279, %v278
    %v290 = vpack.c.b16 %v281, %v280
    %v291 = vpack.c.b16 %v283, %v282
    %300 = vmatpush.bf16.msra.mxu0 %v291
    %301 = vmatpush.bf16.msra.mxu0 %v290
    %302 = vmatpush.bf16.msra.mxu0 %v289
    %303 = vmatpush.bf16.msra.mxu0 %v288
    %304 = vmatpush.bf16.msra.mxu0 %v287
    %305 = vmatpush.bf16.msra.mxu0 %v286
    %306 = vmatpush.bf16.msra.mxu0 %v285
    %307 = vmatpush.bf16.msra.mxu0 %v284
    %308 = vmatmul.bf16.gmra.mxu0 %v250
    %v309 = vpop.f32.mrf.mxu0
    %v310 = vadd.f32 %v251, %v309
    %v311 = vpop.f32.mrf.mxu0
    %312 = vdwg.mxu0
    %s313 = scalar_lea.vmem [#allocation7], 128
    %v314 = vld [vmem:[%s313] sm:$0xf]
    %v315 = vld [vmem:[%s313 + $0x4] sm:$0xf]
    %v316 = vld [vmem:[%s313 + $0x8] sm:$0xf]
    %v317 = vld [vmem:[%s313 + $0xc] sm:$0xf]
    %v318 = vld [vmem:[%s313 + $0x10] sm:$0xf]
    %v319 = vld [vmem:[%s313 + $0x14] sm:$0xf]
    %v320 = vld [vmem:[%s313 + $0x18] sm:$0xf]
    %v321 = vld [vmem:[%s313 + $0x1c] sm:$0xf]
    %v322 = vld [vmem:[%s313 + $0x20] sm:$0xf]
    %v323 = vld [vmem:[%s313 + $0x24] sm:$0xf]
    %v324 = vld [vmem:[%s313 + $0x28] sm:$0xf]
    %v325 = vld [vmem:[%s313 + $0x2c] sm:$0xf]
    %v326 = vld [vmem:[%s313 + $0x30] sm:$0xf]
    %v327 = vld [vmem:[%s313 + $0x34] sm:$0xf]
    %v328 = vld [vmem:[%s313 + $0x38] sm:$0xf]
    %v329 = vld [vmem:[%s313 + $0x3c] sm:$0xf]
    %v330 = vpack.c.bf16 %v310, %v310
    %v331 = vperm.slane %v115, 3
    %v348 = vunpack.c.l.b16 %v314
    %v349 = vunpack.c.l.b16 %v315
    %v350 = vunpack.c.l.b16 %v316
    %v351 = vunpack.c.l.b16 %v317
    %v352 = vunpack.c.l.b16 %v318
    %v353 = vunpack.c.l.b16 %v319
    %v354 = vunpack.c.l.b16 %v320
    %v355 = vunpack.c.l.b16 %v321
    %v356 = vunpack.c.l.b16 %v322
    %v357 = vunpack.c.l.b16 %v323
    %v358 = vunpack.c.l.b16 %v324
    %v359 = vunpack.c.l.b16 %v325
    %v360 = vunpack.c.l.b16 %v326
    %v361 = vunpack.c.l.b16 %v327
    %v362 = vunpack.c.l.b16 %v328
    %v363 = vunpack.c.l.b16 %v329
    %v364 = vpack.c.b16 %v349, %v348
    %v365 = vpack.c.b16 %v351, %v350
    %v366 = vpack.c.b16 %v353, %v352
    %v367 = vpack.c.b16 %v355, %v354
    %v368 = vpack.c.b16 %v357, %v356
    %v369 = vpack.c.b16 %v359, %v358
    %v370 = vpack.c.b16 %v361, %v360
    %v371 = vpack.c.b16 %v363, %v362
    %380 = vmatpush.bf16.msra.mxu0 %v371
    %381 = vmatpush.bf16.msra.mxu0 %v370
    %382 = vmatpush.bf16.msra.mxu0 %v369
    %383 = vmatpush.bf16.msra.mxu0 %v368
    %384 = vmatpush.bf16.msra.mxu0 %v367
    %385 = vmatpush.bf16.msra.mxu0 %v366
    %386 = vmatpush.bf16.msra.mxu0 %v365
    %387 = vmatpush.bf16.msra.mxu0 %v364
    %388 = vmatmul.bf16.gmra.mxu0 %v330
    %v389 = vpop.f32.mrf.mxu0
    %v390 = vadd.f32 %v331, %v389
    %v391 = vpop.f32.mrf.mxu0
    %392 = vdwg.mxu0
    %v393 = vlaneseq
    %v394 = vand.u32 %v393, 127
    %vm395 = vcmp.lt.s32.totalorder %v394, 16
    %vm396 = vcmp.ge.s32.totalorder %v394, 16
    %vm397 = vcmp.lt.s32.totalorder %v394, 32
    %vm398 = vmand %vm396, %vm397
    %v399 = vmul.f32 %v390, 0.5
    %v400 = vmul.f32 %v399, 1.442695
    %v401 = vpow.pop %v400
    %v402 = vsel %vm398, %v401, 0.0
    %v403 = vld [vmem:[#allocation4] sm:$0xff]
    %405 = vrot.lane.b32.xlu0 %v403, 16
    %v406 = vpop.permute.xlu0 %405
    %vm408 = vcmask 130048
    %v409 = vsel %vm408, 0.0, %v406
    %v410 = vsel %vm135, %v409, 0.0
    %v411 = vsel %vm395, %v390, 0.0
    %v412 = vmul.f32 %v410, %v402
    %v413 = vadd.f32 %v411, %v412
    %s414 = scalar_lea.vmem [#allocation7], 192
    %v415 = vld [vmem:[%s414] sm:$0xf]
    %v416 = vld [vmem:[%s414 + $0x4] sm:$0xf]
    %v417 = vld [vmem:[%s414 + $0x8] sm:$0xf]
    %v418 = vld [vmem:[%s414 + $0xc] sm:$0xf]
    %v419 = vld [vmem:[%s414 + $0x10] sm:$0xf]
    %v420 = vld [vmem:[%s414 + $0x14] sm:$0xf]
    %v421 = vld [vmem:[%s414 + $0x18] sm:$0xf]
    %v422 = vld [vmem:[%s414 + $0x1c] sm:$0xf]
    %v423 = vld [vmem:[%s414 + $0x20] sm:$0xf]
    %v424 = vld [vmem:[%s414 + $0x24] sm:$0xf]
    %v425 = vld [vmem:[%s414 + $0x28] sm:$0xf]
    %v426 = vld [vmem:[%s414 + $0x2c] sm:$0xf]
    %v427 = vld [vmem:[%s414 + $0x30] sm:$0xf]
    %v428 = vld [vmem:[%s414 + $0x34] sm:$0xf]
    %v429 = vld [vmem:[%s414 + $0x38] sm:$0xf]
    %v430 = vld [vmem:[%s414 + $0x3c] sm:$0xf]
    %v431 = vpack.c.bf16 %v413, %v413
    %v432 = vperm.slane %v115, 4
    %v449 = vunpack.c.l.b16 %v415
    %v450 = vunpack.c.l.b16 %v416
    %v451 = vunpack.c.l.b16 %v417
    %v452 = vunpack.c.l.b16 %v418
    %v453 = vunpack.c.l.b16 %v419
    %v454 = vunpack.c.l.b16 %v420
    %v455 = vunpack.c.l.b16 %v421
    %v456 = vunpack.c.l.b16 %v422
    %v457 = vunpack.c.l.b16 %v423
    %v458 = vunpack.c.l.b16 %v424
    %v459 = vunpack.c.l.b16 %v425
    %v460 = vunpack.c.l.b16 %v426
    %v461 = vunpack.c.l.b16 %v427
    %v462 = vunpack.c.l.b16 %v428
    %v463 = vunpack.c.l.b16 %v429
    %v464 = vunpack.c.l.b16 %v430
    %v465 = vpack.c.b16 %v450, %v449
    %v466 = vpack.c.b16 %v452, %v451
    %v467 = vpack.c.b16 %v454, %v453
    %v468 = vpack.c.b16 %v456, %v455
    %v469 = vpack.c.b16 %v458, %v457
    %v470 = vpack.c.b16 %v460, %v459
    %v471 = vpack.c.b16 %v462, %v461
    %v472 = vpack.c.b16 %v464, %v463
    %481 = vmatpush.bf16.msra.mxu0 %v472
    %482 = vmatpush.bf16.msra.mxu0 %v471
    %483 = vmatpush.bf16.msra.mxu0 %v470
    %484 = vmatpush.bf16.msra.mxu0 %v469
    %485 = vmatpush.bf16.msra.mxu0 %v468
    %486 = vmatpush.bf16.msra.mxu0 %v467
    %487 = vmatpush.bf16.msra.mxu0 %v466
    %488 = vmatpush.bf16.msra.mxu0 %v465
    %489 = vmatmul.bf16.gmra.mxu0 %v431
    %v490 = vpop.f32.mrf.mxu0
    %v491 = vadd.f32 %v432, %v490
    %v492 = vpop.f32.mrf.mxu0
    %493 = vdwg.mxu0
    %v494 = vmax.f32 %v491, 0.0
    %s495 = scalar_lea.vmem [#allocation7], 256
    %v496 = vld [vmem:[%s495] sm:$0xf]
    %v497 = vld [vmem:[%s495 + $0x4] sm:$0xf]
    %v498 = vld [vmem:[%s495 + $0x8] sm:$0xf]
    %v499 = vld [vmem:[%s495 + $0xc] sm:$0xf]
    %v500 = vld [vmem:[%s495 + $0x10] sm:$0xf]
    %v501 = vld [vmem:[%s495 + $0x14] sm:$0xf]
    %v502 = vld [vmem:[%s495 + $0x18] sm:$0xf]
    %v503 = vld [vmem:[%s495 + $0x1c] sm:$0xf]
    %v504 = vld [vmem:[%s495 + $0x20] sm:$0xf]
    %v505 = vld [vmem:[%s495 + $0x24] sm:$0xf]
    %v506 = vld [vmem:[%s495 + $0x28] sm:$0xf]
    %v507 = vld [vmem:[%s495 + $0x2c] sm:$0xf]
    %v508 = vld [vmem:[%s495 + $0x30] sm:$0xf]
    %v509 = vld [vmem:[%s495 + $0x34] sm:$0xf]
    %v510 = vld [vmem:[%s495 + $0x38] sm:$0xf]
    %v511 = vld [vmem:[%s495 + $0x3c] sm:$0xf]
    %v512 = vpack.c.bf16 %v494, %v494
    %v513 = vperm.slane %v115, 5
    %v530 = vunpack.c.l.b16 %v496
    %v531 = vunpack.c.l.b16 %v497
    %v532 = vunpack.c.l.b16 %v498
    %v533 = vunpack.c.l.b16 %v499
    %v534 = vunpack.c.l.b16 %v500
    %v535 = vunpack.c.l.b16 %v501
    %v536 = vunpack.c.l.b16 %v502
    %v537 = vunpack.c.l.b16 %v503
    %v538 = vunpack.c.l.b16 %v504
    %v539 = vunpack.c.l.b16 %v505
    %v540 = vunpack.c.l.b16 %v506
    %v541 = vunpack.c.l.b16 %v507
    %v542 = vunpack.c.l.b16 %v508
    %v543 = vunpack.c.l.b16 %v509
    %v544 = vunpack.c.l.b16 %v510
    %v545 = vunpack.c.l.b16 %v511
    %v546 = vpack.c.b16 %v531, %v530
    %v547 = vpack.c.b16 %v533, %v532
    %v548 = vpack.c.b16 %v535, %v534
    %v549 = vpack.c.b16 %v537, %v536
    %v550 = vpack.c.b16 %v539, %v538
    %v551 = vpack.c.b16 %v541, %v540
    %v552 = vpack.c.b16 %v543, %v542
    %v553 = vpack.c.b16 %v545, %v544
    %562 = vmatpush.bf16.msra.mxu0 %v553
    %563 = vmatpush.bf16.msra.mxu0 %v552
    %564 = vmatpush.bf16.msra.mxu0 %v551
    %565 = vmatpush.bf16.msra.mxu0 %v550
    %566 = vmatpush.bf16.msra.mxu0 %v549
    %567 = vmatpush.bf16.msra.mxu0 %v548
    %568 = vmatpush.bf16.msra.mxu0 %v547
    %569 = vmatpush.bf16.msra.mxu0 %v546
    %570 = vmatmul.bf16.gmra.mxu0 %v512
    %v571 = vpop.f32.mrf.mxu0
    %v572 = vadd.f32 %v513, %v571
    %v573 = vpop.f32.mrf.mxu0
    %574 = vdwg.mxu0
    %v575 = vmax.f32 %v572, 0.0
    %v576 = vld [vmem:[#allocation9] sm:$0xf]
    %v577 = vld [vmem:[#allocation9 + $0x4] sm:$0xf]
    %v578 = vld [vmem:[#allocation9 + $0x8] sm:$0xf]
    %v579 = vld [vmem:[#allocation9 + $0xc] sm:$0xf]
    %v580 = vld [vmem:[#allocation9 + $0x10] sm:$0xf]
    %v581 = vld [vmem:[#allocation9 + $0x14] sm:$0xf]
    %v582 = vld [vmem:[#allocation9 + $0x18] sm:$0xf]
    %v583 = vld [vmem:[#allocation9 + $0x1c] sm:$0xf]
    %v584 = vld [vmem:[#allocation9 + $0x20] sm:$0xf]
    %v585 = vld [vmem:[#allocation9 + $0x24] sm:$0xf]
    %v586 = vld [vmem:[#allocation9 + $0x28] sm:$0xf]
    %v587 = vld [vmem:[#allocation9 + $0x2c] sm:$0xf]
    %v588 = vld [vmem:[#allocation9 + $0x30] sm:$0xf]
    %v589 = vld [vmem:[#allocation9 + $0x34] sm:$0xf]
    %v590 = vld [vmem:[#allocation9 + $0x38] sm:$0xf]
    %v591 = vld [vmem:[#allocation9 + $0x3c] sm:$0xf]
    %v592 = vld [vmem:[%s6] sm:$0x1]
    %v593 = vpack.c.bf16 %v575, %v575
    %v595 = vperm.slane %v592, 0
    %v613 = vunpack.c.l.b16 %v576
    %v614 = vunpack.c.l.b16 %v577
    %v615 = vunpack.c.l.b16 %v578
    %v616 = vunpack.c.l.b16 %v579
    %v617 = vunpack.c.l.b16 %v580
    %v618 = vunpack.c.l.b16 %v581
    %v619 = vunpack.c.l.b16 %v582
    %v620 = vunpack.c.l.b16 %v583
    %v621 = vunpack.c.l.b16 %v584
    %v622 = vunpack.c.l.b16 %v585
    %v623 = vunpack.c.l.b16 %v586
    %v624 = vunpack.c.l.b16 %v587
    %v625 = vunpack.c.l.b16 %v588
    %v626 = vunpack.c.l.b16 %v589
    %v627 = vunpack.c.l.b16 %v590
    %v628 = vunpack.c.l.b16 %v591
    %v629 = vpack.c.b16 %v614, %v613
    %v630 = vpack.c.b16 %v616, %v615
    %v631 = vpack.c.b16 %v618, %v617
    %v632 = vpack.c.b16 %v620, %v619
    %v633 = vpack.c.b16 %v622, %v621
    %v634 = vpack.c.b16 %v624, %v623
    %v635 = vpack.c.b16 %v626, %v625
    %v636 = vpack.c.b16 %v628, %v627
    %645 = vmatpush.bf16.msra.mxu0 %v636
    %646 = vmatpush.bf16.msra.mxu0 %v635
    %647 = vmatpush.bf16.msra.mxu0 %v634
    %648 = vmatpush.bf16.msra.mxu0 %v633
    %649 = vmatpush.bf16.msra.mxu0 %v632
    %650 = vmatpush.bf16.msra.mxu0 %v631
    %651 = vmatpush.bf16.msra.mxu0 %v630
    %652 = vmatpush.bf16.msra.mxu0 %v629
    %653 = vmatmul.bf16.gmra.mxu0 %v593
    %v654 = vpop.f32.mrf.mxu0
    %v655 = vadd.f32 %v595, %v654
    %v656 = vpop.f32.mrf.mxu0
    %657 = vdwg.mxu0
    %v658 = vadd.f32 %v655, %v390
    %659 = vst [vmem:[%s7] sm:$0xff] %v658
    // Predicated region
    $region54: #{_vae_forward_impl.1} parent=1 // pred_check
      _
    $region55: #{_vae_forward_impl.1} parent=1 // pred_check_branch
      %661 = sbr.rel (0) target = $region57
    $region56: #{_vae_forward_impl.1} parent=1 // pred_region
      _
    $region57: #{_vae_forward_impl.1} parent=1 // pred_fallthru
      _
    // Predicated region
    $region58: #{_vae_forward_impl.1} parent=1 // pred_check
      _
    $region59: #{_vae_forward_impl.1} parent=1 // pred_check_branch
      %663 = sbr.rel (0) target = $region61
    $region60: #{_vae_forward_impl.1} parent=1 // pred_region
      _
    $region61: #{_vae_forward_impl.1} parent=1 // pred_fallthru
      _
    %664 = vsyncpa [#allocation3], 1
    %665 = vsyncpa [#allocation5], 1
    %666 = vsyncpa [#allocation8], 1
    %667 = vsyncpa [#allocation11], 1

// kernel: _vae_forward_impl.1
$region0: #{_vae_forward_impl.1}
  #allocation0 [shape = 'u32[]', space=smem, size = 0x4, offset = 0x4, fixed_abs, tag = 'smem constant byte address 0x4 - core index']
  #allocation1 [shape = 'u32[72,128]{1,0:T(1,128)}', space=vmem, size = 0x9000, scoped, tag = 'internal scratch']
  %s0 = inlined_call_operand.hbm [shape: f32[8,32], index: 0, kind: input, shape index: {}]
  %s1 = inlined_call_operand.hbm [shape: f32[8,16], index: 1, kind: input, shape index: {}]
  %s2 = inlined_call_operand.hbm [shape: bf16[32,128], index: 2, kind: input, shape index: {}]
  %s3 = inlined_call_operand.hbm [shape: bf16[5,128,128], index: 3, kind: input, shape index: {}]
  %s4 = inlined_call_operand.hbm [shape: bf16[128,128], index: 4, kind: input, shape index: {}]
  %s5 = inlined_call_operand.hbm [shape: f32[6,128], index: 5, kind: input, shape index: {}]
  %s6 = inlined_call_operand.vmem [shape: f32[1,128], index: 6, kind: input, shape index: {}]
  %s7 = inlined_call_operand.vmem [shape: f32[8,128], index: 7, kind: output, shape index: {}]
  %s8 = sld [smem:[#allocation0]]
  $region62: #{_vae_forward_impl.1} parent=0
    _
  %s10 = ssub.s32 1, %s8
  %s11 = scalar_select 0, %s10, %s8
  $region1: #{_vae_forward_impl.1} parent=0
    #allocation2 [shape = 'u8[4096]{0}', space=vmem, size = 0x1000, scoped, tag = 'input window, operand 0, single buffered']
    #allocation3 [shape = 's32[1]{0}', space=sflag, size = 0x4, scoped, tag = 'scoped memory for _vae_forward_impl.1']
    #allocation4 [shape = 'u8[4096]{0}', space=vmem, size = 0x1000, scoped, tag = 'input window, operand 1, single buffered']
    #allocation5 [shape = 's32[1]{0}', space=sflag, size = 0x4, scoped, tag = 'scoped memory for _vae_forward_impl.1']
    #allocation6 [shape = 'u8[8192]{0}', space=vmem, size = 0x2000, scoped, tag = 'input window, operand 2, single buffered']
    #allocation7 [shape = 'u8[163840]{0}', space=vmem, size = 0x28000, scoped, tag = 'input window, operand 3, single buffered']
    #allocation8 [shape = 's32[1]{0}', space=sflag, size = 0x4, scoped, tag = 'scoped memory for _vae_forward_impl.1']
    #allocation9 [shape = 'u8[32768]{0}', space=vmem, size = 0x8000, scoped, tag = 'input window, operand 4, single buffered']
    #allocation10 [shape = 'u8[4096]{0}', space=vmem, size = 0x1000, scoped, tag = 'input window, operand 5, single buffered']
    #allocation11 [shape = 's32[1]{0}', space=sflag, size = 0x4, scoped, tag = 'scoped memory for _vae_forward_impl.1']
    %12 = vsyncpa [#allocation3], 0
    %13 = vsyncpa [#allocation5], 0
    %14 = vsyncpa [#allocation8], 0
    %15 = vsyncpa [#allocation11], 0
    // Predicated region
    $region2: #{_vae_forward_impl.1} parent=1 // pred_check
      _
    $region3: #{_vae_forward_impl.1} parent=1 // pred_check_branch
      %17 = sbr.rel (0) target = $region5
    $region4: #{_vae_forward_impl.1} parent=1 // pred_region
      %19 = vsyncadd [#allocation3], 0
      %s21 = sshll.u32 %s0, 4
      %s22 = int_to_ptr.hbm [resolvable:$true] %s21
      %s23 = sshll.u32 [#allocation2], 4
      %s24 = int_to_ptr.vmem [resolvable:$true] %s23
      %26 = dma.hbm_to_vmem [thread:$0]  %s22, 128, %s24, [#allocation3]
    $region5: #{_vae_forward_impl.1} parent=1 // pred_fallthru
      _
    // Predicated region
    $region6: #{_vae_forward_impl.1} parent=1 // pred_check
      _
    $region7: #{_vae_forward_impl.1} parent=1 // pred_check_branch
      %28 = sbr.rel (0) target = $region9
    $region8: #{_vae_forward_impl.1} parent=1 // pred_region
      %30 = vsyncadd [#allocation5], 0
      %s32 = sshll.u32 %s1, 4
      %s33 = int_to_ptr.hbm [resolvable:$true] %s32
      %s34 = sshll.u32 [#allocation4], 4
      %s35 = int_to_ptr.vmem [resolvable:$true] %s34
      %37 = dma.hbm_to_vmem [thread:$0]  %s33, 128, %s35, [#allocation5]
    $region9: #{_vae_forward_impl.1} parent=1 // pred_fallthru
      _
    // Predicated region
    $region10: #{_vae_forward_impl.1} parent=1 // pred_check
      _
    $region11: #{_vae_forward_impl.1} parent=1 // pred_check_branch
      %39 = sbr.rel (0) target = $region13
    $region12: #{_vae_forward_impl.1} parent=1 // pred_region
      %41 = vsyncadd [#allocation5], 0
      %s42 = sshll.u32 %s2, 4
      %s43 = int_to_ptr.hbm [resolvable:$true] %s42
      %s44 = sshll.u32 [#allocation6], 4
      %s45 = int_to_ptr.vmem [resolvable:$true] %s44
      %50 = dma.hbm_to_vmem [thread:$0]  %s43, 256, %s45, [#allocation5], 64, 64, 4
    $region13: #{_vae_forward_impl.1} parent=1 // pred_fallthru
      _
    // Predicated region
    $region14: #{_vae_forward_impl.1} parent=1 // pred_check
      _
    $region15: #{_vae_forward_impl.1} parent=1 // pred_check_branch
      %52 = sbr.rel (0) target = $region17
    $region16: #{_vae_forward_impl.1} parent=1 // pred_region
      %54 = vsyncadd [#allocation8], 0
      %s55 = sshll.u32 %s3, 4
      %s56 = int_to_ptr.hbm [resolvable:$true] %s55
      %s57 = sshll.u32 [#allocation7], 4
      %s58 = int_to_ptr.vmem [resolvable:$true] %s57
      %63 = dma.hbm_to_vmem [thread:$0]  %s56, 5120, %s58, [#allocation8], 64, 64, 4
    $region17: #{_vae_forward_impl.1} parent=1 // pred_fallthru
      _
    // Predicated region
    $region18: #{_vae_forward_impl.1} parent=1 // pred_check
      _
    $region19: #{_vae_forward_impl.1} parent=1 // pred_check_branch
      %65 = sbr.rel (0) target = $region21
    $region20: #{_vae_forward_impl.1} parent=1 // pred_region
      %67 = vsyncadd [#allocation8], 0
      %s68 = sshll.u32 %s4, 4
      %s69 = int_to_ptr.hbm [resolvable:$true] %s68
      %s70 = sshll.u32 [#allocation9], 4
      %s71 = int_to_ptr.vmem [resolvable:$true] %s70
      %76 = dma.hbm_to_vmem [thread:$0]  %s69, 1024, %s71, [#allocation8], 64, 64, 4
    $region21: #{_vae_forward_impl.1} parent=1 // pred_fallthru
      _
    // Predicated region
    $region22: #{_vae_forward_impl.1} parent=1 // pred_check
      _
    $region23: #{_vae_forward_impl.1} parent=1 // pred_check_branch
      %78 = sbr.rel (0) target = $region25
    $region24: #{_vae_forward_impl.1} parent=1 // pred_region
      %80 = vsyncadd [#allocation11], 0
      %s82 = sshll.u32 %s5, 4
      %s83 = int_to_ptr.hbm [resolvable:$true] %s82
      %s84 = sshll.u32 [#allocation10], 4
      %s85 = int_to_ptr.vmem [resolvable:$true] %s84
      %87 = dma.hbm_to_vmem [thread:$0]  %s83, 128, %s85, [#allocation11]
    $region25: #{_vae_forward_impl.1} parent=1 // pred_fallthru
      _
    // Predicated region
    $region26: #{_vae_forward_impl.1} parent=1 // pred_check
      _
    $region27: #{_vae_forward_impl.1} parent=1 // pred_check_branch
      %89 = sbr.rel (0) target = $region29
    $region28: #{_vae_forward_impl.1} parent=1 // pred_region
      _
    $region29: #{_vae_forward_impl.1} parent=1 // pred_fallthru
      _
    // Predicated region
    $region30: #{_vae_forward_impl.1} parent=1 // pred_check
      _
    $region31: #{_vae_forward_impl.1} parent=1 // pred_check_branch
      %91 = sbr.rel (0) target = $region33
    $region32: #{_vae_forward_impl.1} parent=1 // pred_region
      %93 = dma.done [#allocation3], 128
    $region33: #{_vae_forward_impl.1} parent=1 // pred_fallthru
      _
    // Predicated region
    $region34: #{_vae_forward_impl.1} parent=1 // pred_check
      _
    $region35: #{_vae_forward_impl.1} parent=1 // pred_check_branch
      %95 = sbr.rel (0) target = $region37
    $region36: #{_vae_forward_impl.1} parent=1 // pred_region
      %97 = dma.done [#allocation5], 128
    $region37: #{_vae_forward_impl.1} parent=1 // pred_fallthru
      _
    // Predicated region
    $region38: #{_vae_forward_impl.1} parent=1 // pred_check
      _
    $region39: #{_vae_forward_impl.1} parent=1 // pred_check_branch
      %99 = sbr.rel (0) target = $region41
    $region40: #{_vae_forward_impl.1} parent=1 // pred_region
      %101 = dma.done [#allocation5], 256
    $region41: #{_vae_forward_impl.1} parent=1 // pred_fallthru
      _
    // Predicated region
    $region42: #{_vae_forward_impl.1} parent=1 // pred_check
      _
    $region43: #{_vae_forward_impl.1} parent=1 // pred_check_branch
      %103 = sbr.rel (0) target = $region45
    $region44: #{_vae_forward_impl.1} parent=1 // pred_region
      %105 = dma.done [#allocation8], 5120
    $region45: #{_vae_forward_impl.1} parent=1 // pred_fallthru
      _
    // Predicated region
    $region46: #{_vae_forward_impl.1} parent=1 // pred_check
      _
    $region47: #{_vae_forward_impl.1} parent=1 // pred_check_branch
      %107 = sbr.rel (0) target = $region49
    $region48: #{_vae_forward_impl.1} parent=1 // pred_region
      %109 = dma.done [#allocation8], 1024
    $region49: #{_vae_forward_impl.1} parent=1 // pred_fallthru
      _
    // Predicated region
    $region50: #{_vae_forward_impl.1} parent=1 // pred_check
      _
    $region51: #{_vae_forward_impl.1} parent=1 // pred_check_branch
      %111 = sbr.rel (0) target = $region53
    $region52: #{_vae_forward_impl.1} parent=1 // pred_region
      %113 = dma.done [#allocation11], 128
    $region53: #{_vae_forward_impl.1} parent=1 // pred_fallthru
      _
    %v115 = vld [vmem:[#allocation10] sm:$0x3f]
    %v116 = vld [vmem:[#allocation2] sm:$0xff]
    %v117 = vld [vmem:[#allocation6] sm:$0xf]
    %v118 = vld [vmem:[#allocation6 + $0x4] sm:$0xf]
    %v119 = vld [vmem:[#allocation6 + $0x8] sm:$0xf]
    %v120 = vld [vmem:[#allocation6 + $0xc] sm:$0xf]
    %v121 = vpack.c.bf16 %v116, %v116
    %v122 = vperm.slane %v115, 0
    %v127 = vunpack.c.l.b16 %v117
    %v128 = vunpack.c.l.b16 %v118
    %v129 = vunpack.c.l.b16 %v119
    %v130 = vunpack.c.l.b16 %v120
    %v131 = vpack.c.b16 %v128, %v127
    %v132 = vpack.c.b16 %v130, %v129
    %vm135 = vcmask 261120
    %v137 = vsel %vm135, %v121, 0
    %139 = vmatpush.bf16.msra.mxu0 0
    %140 = vmatpush.bf16.msra.mxu0 0
    %141 = vmatpush.bf16.msra.mxu0 0
    %142 = vmatpush.bf16.msra.mxu0 0
    %143 = vmatpush.bf16.msra.mxu0 0
    %144 = vmatpush.bf16.msra.mxu0 0
    %145 = vmatpush.bf16.msra.mxu0 %v132
    %146 = vmatpush.bf16.msra.mxu0 %v131
    %147 = vmatmul.bf16.gmra.mxu0 %v137
    %v148 = vpop.f32.mrf.mxu0
    %v149 = vadd.f32 %v122, %v148
    %v150 = vpop.f32.mrf.mxu0
    %151 = vdwg.mxu0
    %v152 = vmax.f32 %v149, 0.0
    %v153 = vld [vmem:[#allocation7] sm:$0xf]
    %v154 = vld [vmem:[#allocation7 + $0x4] sm:$0xf]
    %v155 = vld [vmem:[#allocation7 + $0x8] sm:$0xf]
    %v156 = vld [vmem:[#allocation7 + $0xc] sm:$0xf]
    %v157 = vld [vmem:[#allocation7 + $0x10] sm:$0xf]
    %v158 = vld [vmem:[#allocation7 + $0x14] sm:$0xf]
    %v159 = vld [vmem:[#allocation7 + $0x18] sm:$0xf]
    %v160 = vld [vmem:[#allocation7 + $0x1c] sm:$0xf]
    %v161 = vld [vmem:[#allocation7 + $0x20] sm:$0xf]
    %v162 = vld [vmem:[#allocation7 + $0x24] sm:$0xf]
    %v163 = vld [vmem:[#allocation7 + $0x28] sm:$0xf]
    %v164 = vld [vmem:[#allocation7 + $0x2c] sm:$0xf]
    %v165 = vld [vmem:[#allocation7 + $0x30] sm:$0xf]
    %v166 = vld [vmem:[#allocation7 + $0x34] sm:$0xf]
    %v167 = vld [vmem:[#allocation7 + $0x38] sm:$0xf]
    %v168 = vld [vmem:[#allocation7 + $0x3c] sm:$0xf]
    %v169 = vpack.c.bf16 %v152, %v152
    %v170 = vperm.slane %v115, 1
    %v187 = vunpack.c.l.b16 %v153
    %v188 = vunpack.c.l.b16 %v154
    %v189 = vunpack.c.l.b16 %v155
    %v190 = vunpack.c.l.b16 %v156
    %v191 = vunpack.c.l.b16 %v157
    %v192 = vunpack.c.l.b16 %v158
    %v193 = vunpack.c.l.b16 %v159
    %v194 = vunpack.c.l.b16 %v160
    %v195 = vunpack.c.l.b16 %v161
    %v196 = vunpack.c.l.b16 %v162
    %v197 = vunpack.c.l.b16 %v163
    %v198 = vunpack.c.l.b16 %v164
    %v199 = vunpack.c.l.b16 %v165
    %v200 = vunpack.c.l.b16 %v166
    %v201 = vunpack.c.l.b16 %v167
    %v202 = vunpack.c.l.b16 %v168
    %v203 = vpack.c.b16 %v188, %v187
    %v204 = vpack.c.b16 %v190, %v189
    %v205 = vpack.c.b16 %v192, %v191
    %v206 = vpack.c.b16 %v194, %v193
    %v207 = vpack.c.b16 %v196, %v195
    %v208 = vpack.c.b16 %v198, %v197
    %v209 = vpack.c.b16 %v200, %v199
    %v210 = vpack.c.b16 %v202, %v201
    %219 = vmatpush.bf16.msra.mxu0 %v210
    %220 = vmatpush.bf16.msra.mxu0 %v209
    %221 = vmatpush.bf16.msra.mxu0 %v208
    %222 = vmatpush.bf16.msra.mxu0 %v207
    %223 = vmatpush.bf16.msra.mxu0 %v206
    %224 = vmatpush.bf16.msra.mxu0 %v205
    %225 = vmatpush.bf16.msra.mxu0 %v204
    %226 = vmatpush.bf16.msra.mxu0 %v203
    %227 = vmatmul.bf16.gmra.mxu0 %v169
    %v228 = vpop.f32.mrf.mxu0
    %v229 = vadd.f32 %v170, %v228
    %v230 = vpop.f32.mrf.mxu0
    %231 = vdwg.mxu0
    %v232 = vmax.f32 %v229, 0.0
    %s233 = scalar_lea.vmem [#allocation7], 64
    %v234 = vld [vmem:[%s233] sm:$0xf]
    %v235 = vld [vmem:[%s233 + $0x4] sm:$0xf]
    %v236 = vld [vmem:[%s233 + $0x8] sm:$0xf]
    %v237 = vld [vmem:[%s233 + $0xc] sm:$0xf]
    %v238 = vld [vmem:[%s233 + $0x10] sm:$0xf]
    %v239 = vld [vmem:[%s233 + $0x14] sm:$0xf]
    %v240 = vld [vmem:[%s233 + $0x18] sm:$0xf]
    %v241 = vld [vmem:[%s233 + $0x1c] sm:$0xf]
    %v242 = vld [vmem:[%s233 + $0x20] sm:$0xf]
    %v243 = vld [vmem:[%s233 + $0x24] sm:$0xf]
    %v244 = vld [vmem:[%s233 + $0x28] sm:$0xf]
    %v245 = vld [vmem:[%s233 + $0x2c] sm:$0xf]
    %v246 = vld [vmem:[%s233 + $0x30] sm:$0xf]
    %v247 = vld [vmem:[%s233 + $0x34] sm:$0xf]
    %v248 = vld [vmem:[%s233 + $0x38] sm:$0xf]
    %v249 = vld [vmem:[%s233 + $0x3c] sm:$0xf]
    %v250 = vpack.c.bf16 %v232, %v232
    %v251 = vperm.slane %v115, 2
    %v268 = vunpack.c.l.b16 %v234
    %v269 = vunpack.c.l.b16 %v235
    %v270 = vunpack.c.l.b16 %v236
    %v271 = vunpack.c.l.b16 %v237
    %v272 = vunpack.c.l.b16 %v238
    %v273 = vunpack.c.l.b16 %v239
    %v274 = vunpack.c.l.b16 %v240
    %v275 = vunpack.c.l.b16 %v241
    %v276 = vunpack.c.l.b16 %v242
    %v277 = vunpack.c.l.b16 %v243
    %v278 = vunpack.c.l.b16 %v244
    %v279 = vunpack.c.l.b16 %v245
    %v280 = vunpack.c.l.b16 %v246
    %v281 = vunpack.c.l.b16 %v247
    %v282 = vunpack.c.l.b16 %v248
    %v283 = vunpack.c.l.b16 %v249
    %v284 = vpack.c.b16 %v269, %v268
    %v285 = vpack.c.b16 %v271, %v270
    %v286 = vpack.c.b16 %v273, %v272
    %v287 = vpack.c.b16 %v275, %v274
    %v288 = vpack.c.b16 %v277, %v276
    %v289 = vpack.c.b16 %v279, %v278
    %v290 = vpack.c.b16 %v281, %v280
    %v291 = vpack.c.b16 %v283, %v282
    %300 = vmatpush.bf16.msra.mxu0 %v291
    %301 = vmatpush.bf16.msra.mxu0 %v290
    %302 = vmatpush.bf16.msra.mxu0 %v289
    %303 = vmatpush.bf16.msra.mxu0 %v288
    %304 = vmatpush.bf16.msra.mxu0 %v287
    %305 = vmatpush.bf16.msra.mxu0 %v286
    %306 = vmatpush.bf16.msra.mxu0 %v285
    %307 = vmatpush.bf16.msra.mxu0 %v284
    %308 = vmatmul.bf16.gmra.mxu0 %v250
    %v309 = vpop.f32.mrf.mxu0
    %v310 = vadd.f32 %v251, %v309
    %v311 = vpop.f32.mrf.mxu0
    %312 = vdwg.mxu0
    %s313 = scalar_lea.vmem [#allocation7], 128
    %v314 = vld [vmem:[%s313] sm:$0xf]
    %v315 = vld [vmem:[%s313 + $0x4] sm:$0xf]
    %v316 = vld [vmem:[%s313 + $0x8] sm:$0xf]
    %v317 = vld [vmem:[%s313 + $0xc] sm:$0xf]
    %v318 = vld [vmem:[%s313 + $0x10] sm:$0xf]
    %v319 = vld [vmem:[%s313 + $0x14] sm:$0xf]
    %v320 = vld [vmem:[%s313 + $0x18] sm:$0xf]
    %v321 = vld [vmem:[%s313 + $0x1c] sm:$0xf]
    %v322 = vld [vmem:[%s313 + $0x20] sm:$0xf]
    %v323 = vld [vmem:[%s313 + $0x24] sm:$0xf]
    %v324 = vld [vmem:[%s313 + $0x28] sm:$0xf]
    %v325 = vld [vmem:[%s313 + $0x2c] sm:$0xf]
    %v326 = vld [vmem:[%s313 + $0x30] sm:$0xf]
    %v327 = vld [vmem:[%s313 + $0x34] sm:$0xf]
    %v328 = vld [vmem:[%s313 + $0x38] sm:$0xf]
    %v329 = vld [vmem:[%s313 + $0x3c] sm:$0xf]
    %v330 = vpack.c.bf16 %v310, %v310
    %v331 = vperm.slane %v115, 3
    %v348 = vunpack.c.l.b16 %v314
    %v349 = vunpack.c.l.b16 %v315
    %v350 = vunpack.c.l.b16 %v316
    %v351 = vunpack.c.l.b16 %v317
    %v352 = vunpack.c.l.b16 %v318
    %v353 = vunpack.c.l.b16 %v319
    %v354 = vunpack.c.l.b16 %v320
    %v355 = vunpack.c.l.b16 %v321
    %v356 = vunpack.c.l.b16 %v322
    %v357 = vunpack.c.l.b16 %v323
    %v358 = vunpack.c.l.b16 %v324
    %v359 = vunpack.c.l.b16 %v325
    %v360 = vunpack.c.l.b16 %v326
    %v361 = vunpack.c.l.b16 %v327
    %v362 = vunpack.c.l.b16 %v328
    %v363 = vunpack.c.l.b16 %v329
    %v364 = vpack.c.b16 %v349, %v348
    %v365 = vpack.c.b16 %v351, %v350
    %v366 = vpack.c.b16 %v353, %v352
    %v367 = vpack.c.b16 %v355, %v354
    %v368 = vpack.c.b16 %v357, %v356
    %v369 = vpack.c.b16 %v359, %v358
    %v370 = vpack.c.b16 %v361, %v360
    %v371 = vpack.c.b16 %v363, %v362
    %380 = vmatpush.bf16.msra.mxu0 %v371
    %381 = vmatpush.bf16.msra.mxu0 %v370
    %382 = vmatpush.bf16.msra.mxu0 %v369
    %383 = vmatpush.bf16.msra.mxu0 %v368
    %384 = vmatpush.bf16.msra.mxu0 %v367
    %385 = vmatpush.bf16.msra.mxu0 %v366
    %386 = vmatpush.bf16.msra.mxu0 %v365
    %387 = vmatpush.bf16.msra.mxu0 %v364
    %388 = vmatmul.bf16.gmra.mxu0 %v330
    %v389 = vpop.f32.mrf.mxu0
    %v390 = vadd.f32 %v331, %v389
    %v391 = vpop.f32.mrf.mxu0
    %392 = vdwg.mxu0
    %v393 = vlaneseq
    %v394 = vand.u32 %v393, 127
    %vm395 = vcmp.lt.s32.totalorder %v394, 16
    %vm396 = vcmp.ge.s32.totalorder %v394, 16
    %vm397 = vcmp.lt.s32.totalorder %v394, 32
    %vm398 = vmand %vm396, %vm397
    %v399 = vmul.f32 %v390, 0.5
    %v400 = vmul.f32 %v399, 1.442695
    %v401 = vpow.pop %v400
    %v402 = vsel %vm398, %v401, 0.0
    %v403 = vld [vmem:[#allocation4] sm:$0xff]
    %405 = vrot.lane.b32.xlu0 %v403, 16
    %v406 = vpop.permute.xlu0 %405
    %vm408 = vcmask 130048
    %v409 = vsel %vm408, 0.0, %v406
    %v410 = vsel %vm135, %v409, 0.0
    %v411 = vsel %vm395, %v390, 0.0
    %v412 = vmul.f32 %v410, %v402
    %v413 = vadd.f32 %v411, %v412
    %s414 = scalar_lea.vmem [#allocation7], 192
    %v415 = vld [vmem:[%s414] sm:$0xf]
    %v416 = vld [vmem:[%s414 + $0x4] sm:$0xf]
    %v417 = vld [vmem:[%s414 + $0x8] sm:$0xf]
    %v418 = vld [vmem:[%s414 + $0xc] sm:$0xf]
    %v419 = vld [vmem:[%s414 + $0x10] sm:$0xf]
    %v420 = vld [vmem:[%s414 + $0x14] sm:$0xf]
    %v421 = vld [vmem:[%s414 + $0x18] sm:$0xf]
    %v422 = vld [vmem:[%s414 + $0x1c] sm:$0xf]
    %v423 = vld [vmem:[%s414 + $0x20] sm:$0xf]
    %v424 = vld [vmem:[%s414 + $0x24] sm:$0xf]
    %v425 = vld [vmem:[%s414 + $0x28] sm:$0xf]
    %v426 = vld [vmem:[%s414 + $0x2c] sm:$0xf]
    %v427 = vld [vmem:[%s414 + $0x30] sm:$0xf]
    %v428 = vld [vmem:[%s414 + $0x34] sm:$0xf]
    %v429 = vld [vmem:[%s414 + $0x38] sm:$0xf]
    %v430 = vld [vmem:[%s414 + $0x3c] sm:$0xf]
    %v431 = vpack.c.bf16 %v413, %v413
    %v432 = vperm.slane %v115, 4
    %v449 = vunpack.c.l.b16 %v415
    %v450 = vunpack.c.l.b16 %v416
    %v451 = vunpack.c.l.b16 %v417
    %v452 = vunpack.c.l.b16 %v418
    %v453 = vunpack.c.l.b16 %v419
    %v454 = vunpack.c.l.b16 %v420
    %v455 = vunpack.c.l.b16 %v421
    %v456 = vunpack.c.l.b16 %v422
    %v457 = vunpack.c.l.b16 %v423
    %v458 = vunpack.c.l.b16 %v424
    %v459 = vunpack.c.l.b16 %v425
    %v460 = vunpack.c.l.b16 %v426
    %v461 = vunpack.c.l.b16 %v427
    %v462 = vunpack.c.l.b16 %v428
    %v463 = vunpack.c.l.b16 %v429
    %v464 = vunpack.c.l.b16 %v430
    %v465 = vpack.c.b16 %v450, %v449
    %v466 = vpack.c.b16 %v452, %v451
    %v467 = vpack.c.b16 %v454, %v453
    %v468 = vpack.c.b16 %v456, %v455
    %v469 = vpack.c.b16 %v458, %v457
    %v470 = vpack.c.b16 %v460, %v459
    %v471 = vpack.c.b16 %v462, %v461
    %v472 = vpack.c.b16 %v464, %v463
    %481 = vmatpush.bf16.msra.mxu0 %v472
    %482 = vmatpush.bf16.msra.mxu0 %v471
    %483 = vmatpush.bf16.msra.mxu0 %v470
    %484 = vmatpush.bf16.msra.mxu0 %v469
    %485 = vmatpush.bf16.msra.mxu0 %v468
    %486 = vmatpush.bf16.msra.mxu0 %v467
    %487 = vmatpush.bf16.msra.mxu0 %v466
    %488 = vmatpush.bf16.msra.mxu0 %v465
    %489 = vmatmul.bf16.gmra.mxu0 %v431
    %v490 = vpop.f32.mrf.mxu0
    %v491 = vadd.f32 %v432, %v490
    %v492 = vpop.f32.mrf.mxu0
    %493 = vdwg.mxu0
    %v494 = vmax.f32 %v491, 0.0
    %s495 = scalar_lea.vmem [#allocation7], 256
    %v496 = vld [vmem:[%s495] sm:$0xf]
    %v497 = vld [vmem:[%s495 + $0x4] sm:$0xf]
    %v498 = vld [vmem:[%s495 + $0x8] sm:$0xf]
    %v499 = vld [vmem:[%s495 + $0xc] sm:$0xf]
    %v500 = vld [vmem:[%s495 + $0x10] sm:$0xf]
    %v501 = vld [vmem:[%s495 + $0x14] sm:$0xf]
    %v502 = vld [vmem:[%s495 + $0x18] sm:$0xf]
    %v503 = vld [vmem:[%s495 + $0x1c] sm:$0xf]
    %v504 = vld [vmem:[%s495 + $0x20] sm:$0xf]
    %v505 = vld [vmem:[%s495 + $0x24] sm:$0xf]
    %v506 = vld [vmem:[%s495 + $0x28] sm:$0xf]
    %v507 = vld [vmem:[%s495 + $0x2c] sm:$0xf]
    %v508 = vld [vmem:[%s495 + $0x30] sm:$0xf]
    %v509 = vld [vmem:[%s495 + $0x34] sm:$0xf]
    %v510 = vld [vmem:[%s495 + $0x38] sm:$0xf]
    %v511 = vld [vmem:[%s495 + $0x3c] sm:$0xf]
    %v512 = vpack.c.bf16 %v494, %v494
    %v513 = vperm.slane %v115, 5
    %v530 = vunpack.c.l.b16 %v496
    %v531 = vunpack.c.l.b16 %v497
    %v532 = vunpack.c.l.b16 %v498
    %v533 = vunpack.c.l.b16 %v499
    %v534 = vunpack.c.l.b16 %v500
    %v535 = vunpack.c.l.b16 %v501
    %v536 = vunpack.c.l.b16 %v502
    %v537 = vunpack.c.l.b16 %v503
    %v538 = vunpack.c.l.b16 %v504
    %v539 = vunpack.c.l.b16 %v505
    %v540 = vunpack.c.l.b16 %v506
    %v541 = vunpack.c.l.b16 %v507
    %v542 = vunpack.c.l.b16 %v508
    %v543 = vunpack.c.l.b16 %v509
    %v544 = vunpack.c.l.b16 %v510
    %v545 = vunpack.c.l.b16 %v511
    %v546 = vpack.c.b16 %v531, %v530
    %v547 = vpack.c.b16 %v533, %v532
    %v548 = vpack.c.b16 %v535, %v534
    %v549 = vpack.c.b16 %v537, %v536
    %v550 = vpack.c.b16 %v539, %v538
    %v551 = vpack.c.b16 %v541, %v540
    %v552 = vpack.c.b16 %v543, %v542
    %v553 = vpack.c.b16 %v545, %v544
    %562 = vmatpush.bf16.msra.mxu0 %v553
    %563 = vmatpush.bf16.msra.mxu0 %v552
    %564 = vmatpush.bf16.msra.mxu0 %v551
    %565 = vmatpush.bf16.msra.mxu0 %v550
    %566 = vmatpush.bf16.msra.mxu0 %v549
    %567 = vmatpush.bf16.msra.mxu0 %v548
    %568 = vmatpush.bf16.msra.mxu0 %v547
    %569 = vmatpush.bf16.msra.mxu0 %v546
    %570 = vmatmul.bf16.gmra.mxu0 %v512
    %v571 = vpop.f32.mrf.mxu0
    %v572 = vadd.f32 %v513, %v571
    %v573 = vpop.f32.mrf.mxu0
    %574 = vdwg.mxu0
    %v575 = vmax.f32 %v572, 0.0
    %v576 = vld [vmem:[#allocation9] sm:$0xf]
    %v577 = vld [vmem:[#allocation9 + $0x4] sm:$0xf]
    %v578 = vld [vmem:[#allocation9 + $0x8] sm:$0xf]
    %v579 = vld [vmem:[#allocation9 + $0xc] sm:$0xf]
    %v580 = vld [vmem:[#allocation9 + $0x10] sm:$0xf]
    %v581 = vld [vmem:[#allocation9 + $0x14] sm:$0xf]
    %v582 = vld [vmem:[#allocation9 + $0x18] sm:$0xf]
    %v583 = vld [vmem:[#allocation9 + $0x1c] sm:$0xf]
    %v584 = vld [vmem:[#allocation9 + $0x20] sm:$0xf]
    %v585 = vld [vmem:[#allocation9 + $0x24] sm:$0xf]
    %v586 = vld [vmem:[#allocation9 + $0x28] sm:$0xf]
    %v587 = vld [vmem:[#allocation9 + $0x2c] sm:$0xf]
    %v588 = vld [vmem:[#allocation9 + $0x30] sm:$0xf]
    %v589 = vld [vmem:[#allocation9 + $0x34] sm:$0xf]
    %v590 = vld [vmem:[#allocation9 + $0x38] sm:$0xf]
    %v591 = vld [vmem:[#allocation9 + $0x3c] sm:$0xf]
    %v592 = vld [vmem:[%s6] sm:$0x1]
    %v593 = vpack.c.bf16 %v575, %v575
    %v595 = vperm.slane %v592, 0
    %v613 = vunpack.c.l.b16 %v576
    %v614 = vunpack.c.l.b16 %v577
    %v615 = vunpack.c.l.b16 %v578
    %v616 = vunpack.c.l.b16 %v579
    %v617 = vunpack.c.l.b16 %v580
    %v618 = vunpack.c.l.b16 %v581
    %v619 = vunpack.c.l.b16 %v582
    %v620 = vunpack.c.l.b16 %v583
    %v621 = vunpack.c.l.b16 %v584
    %v622 = vunpack.c.l.b16 %v585
    %v623 = vunpack.c.l.b16 %v586
    %v624 = vunpack.c.l.b16 %v587
    %v625 = vunpack.c.l.b16 %v588
    %v626 = vunpack.c.l.b16 %v589
    %v627 = vunpack.c.l.b16 %v590
    %v628 = vunpack.c.l.b16 %v591
    %v629 = vpack.c.b16 %v614, %v613
    %v630 = vpack.c.b16 %v616, %v615
    %v631 = vpack.c.b16 %v618, %v617
    %v632 = vpack.c.b16 %v620, %v619
    %v633 = vpack.c.b16 %v622, %v621
    %v634 = vpack.c.b16 %v624, %v623
    %v635 = vpack.c.b16 %v626, %v625
    %v636 = vpack.c.b16 %v628, %v627
    %645 = vmatpush.bf16.msra.mxu0 %v636
    %646 = vmatpush.bf16.msra.mxu0 %v635
    %647 = vmatpush.bf16.msra.mxu0 %v634
    %648 = vmatpush.bf16.msra.mxu0 %v633
    %649 = vmatpush.bf16.msra.mxu0 %v632
    %650 = vmatpush.bf16.msra.mxu0 %v631
    %651 = vmatpush.bf16.msra.mxu0 %v630
    %652 = vmatpush.bf16.msra.mxu0 %v629
    %653 = vmatmul.bf16.gmra.mxu0 %v593
    %v654 = vpop.f32.mrf.mxu0
    %v655 = vadd.f32 %v595, %v654
    %v656 = vpop.f32.mrf.mxu0
    %657 = vdwg.mxu0
    %v658 = vadd.f32 %v655, %v390
    %659 = vst [vmem:[%s7] sm:$0xff] %v658
    // Predicated region
    $region54: #{_vae_forward_impl.1} parent=1 // pred_check
      _
    $region55: #{_vae_forward_impl.1} parent=1 // pred_check_branch
      %661 = sbr.rel (0) target = $region57
    $region56: #{_vae_forward_impl.1} parent=1 // pred_region
      _
    $region57: #{_vae_forward_impl.1} parent=1 // pred_fallthru
      _
    // Predicated region
    $region58: #{_vae_forward_impl.1} parent=1 // pred_check
      _
    $region59: #{_vae_forward_impl.1} parent=1 // pred_check_branch
      %663 = sbr.rel (0) target = $region61
    $region60: #{_vae_forward_impl.1} parent=1 // pred_region
      _
    $region61: #{_vae_forward_impl.1} parent=1 // pred_fallthru
      _
    %664 = vsyncpa [#allocation3], 1
    %665 = vsyncpa [#allocation5], 1
    %666 = vsyncpa [#allocation8], 1
    %667 = vsyncpa [#allocation11], 1

</llo_original>
